<compile_context>
chip_gen: v7x
topology: tpu7x:2x2x1
jax: 0.10.0
libtpu: 0.0.40
codegen_flags: <defaults>
</compile_context>

<pallas_src>
import functools

import jax
import jax.numpy as jnp
from jax import lax
from jax.experimental import pallas as pl
from jax.experimental.pallas import tpu as pltpu

G = 128  # lane width of one direction's packed gate block


def _round_up(x, m):
    return (x + m - 1) // m * m


# ----------------------------------------------------------------------------
# Pallas kernel: fused embedding + bidirectional GRU recurrence + FFNN head
# ----------------------------------------------------------------------------
def gru_head_kernel(
    tok_ref,      # (T, Bt, 1)  i32   token ids for this batch tile
    lens_ref,     # (Bt, 1)     i32   unpadded lengths (0 for pad rows)
    wtok_ref,     # (Vp, 2G)    bf16  emb@W_ih + b_ih (+ b_hh_{r,z}), fwd|bwd
    whh_f_ref,    # (G, G)      bf16  forward  hidden->gates (rows [H:G) zero)
    bhn_f_ref,    # (1, G)      f32   forward  b_hh_n at lanes [0:H)
    whh_b_ref,    # (G, G)      bf16  backward hidden->gates
    bhn_b_ref,    # (1, G)      f32
    w1_ref,       # (2G, Ep)    bf16  head layer 1
    b1_ref,       # (1, Ep)     f32
    w2_ref,       # (Ep, Vop)   bf16  head layer 2
    b2_ref,       # (1, Vop)    f32
    out_ref,      # (Bt, Vop)   f32
    gi_ref,       # (T*Bt, 2G)  bf16  scratch: input-side gate pre-activations
    *,
    hidden,       # H (static)
):
    T, Bt = tok_ref.shape[0], tok_ref.shape[1]
    Vp = wtok_ref.shape[0]
    f32 = jnp.float32
    wdt = wtok_ref.dtype
    H = hidden
    r_shift = (G - 2 * H) % G      # lanes [2H:3H) (r)            -> [0:H)
    z_shift = (G - H) % G          # lanes [H:2H) / [G-H:G) (z)   -> [0:H)

    # ---- Fused embedding gather + input projections (+ folded biases) for
    #      ALL timesteps and BOTH directions in one hoisted matmul.
    # TODO(synk): if the char vocab grows past ~1-2K padded lanes, replace the
    # one-hot matmul with a scalar-prefetch row gather of wtok.
    tok = tok_ref[...]                                          # (T, Bt, 1)
    iota_v = lax.broadcasted_iota(jnp.int32, (T, Bt, Vp), 2)
    onehot = (iota_v == tok).reshape(T * Bt, Vp).astype(wdt)    # free reshape
    gi_ref[...] = jnp.dot(onehot, wtok_ref[...],
                          preferred_element_type=f32).astype(wdt)

    lens = lens_ref[...]                                        # (Bt, 1) i32

    def cell(h, gi, whh_ref, bhn_ref):
        # Lane layout of one direction's 128-lane block:
        #   [0:H)=n   [H:2H)=z   [2H:3H)=r   [G-H:G)=z (copy for the roll)
        # h's true value lives in lanes [0:H); rows [H:G) of W_hh and of the
        # head's W1 are zero, so stale lanes never leak into real math.
        ghn = jnp.dot(h.astype(wdt), whh_ref[...],
                      preferred_element_type=f32) + bhn_ref[...]    # gh + b_hh_n
        a = jax.nn.sigmoid(gi + ghn)                 # r, z valid at their lanes
        r_al = pltpu.roll(a, r_shift, axis=1)        # r -> lanes [0:H)
        z_al = pltpu.roll(a, z_shift, axis=1)        # z -> lanes [0:H)
        n = jnp.tanh(gi + r_al * ghn)                # valid at lanes [0:H)
        return (1.0 - z_al) * n + z_al * h

    # ---- Fused, fully-unrolled fwd/bwd recurrence (T small & static).
    #      Only h @ W_hh is on the serial chain.
    h_f = jnp.zeros((Bt, G), f32)
    h_b = jnp.zeros((Bt, G), f32)
    for t in range(T):
        tb = T - 1 - t
        gi_f = gi_ref[pl.ds(t * Bt, Bt), pl.ds(0, G)].astype(f32)
        gi_b = gi_ref[pl.ds(tb * Bt, Bt), pl.ds(G, G)].astype(f32)
        # pack_padded_sequence semantics: update only while inside the sequence
        h_f = jnp.where(t < lens, cell(h_f, gi_f, whh_f_ref, bhn_f_ref), h_f)
        h_b = jnp.where(tb < lens, cell(h_b, gi_b, whh_b_ref, bhn_b_ref), h_b)

    # ---- FFNN head: Linear(2H->E) -> LeakyReLU(0.01) -> Linear(E->V_out)
    hid = jnp.concatenate([h_f, h_b], axis=1)                   # (Bt, 2G)
    y1 = jnp.dot(hid.astype(wdt), w1_ref[...],
                 preferred_element_type=f32) + b1_ref[...]
    y1 = jnp.where(y1 > 0, y1, 0.01 * y1)
    out_ref[...] = jnp.dot(y1.astype(wdt), w2_ref[...],
                           preferred_element_type=f32) + b2_ref[...]   # dense vst


# ----------------------------------------------------------------------------
# Parameter construction (deterministic, PyTorch-like uniform init)
# ----------------------------------------------------------------------------
def init_params(key, input_dim, output_dim, char_embed_dim, hidden_dim):
    E, H, V_in, V_out = char_embed_dim, hidden_dim, input_dim, output_dim
    ks = jax.random.split(key, 16)
    u = lambda k, shape, bound: jax.random.uniform(
        k, shape, jnp.float32, -bound, bound)
    gb = 1.0 / jnp.sqrt(H)

    return {
        "embedding": jax.random.normal(ks[0], (V_in, E), jnp.float32),
        # GRU weights stored transposed: (in_features, 3H), gate order (r,z,n)
        "wih_f": u(ks[1], (E, 3 * H), gb), "whh_f": u(ks[2], (H, 3 * H), gb),
        "bih_f": u(ks[3], (1, 3 * H), gb), "bhh_f": u(ks[4], (1, 3 * H), gb),
        "wih_b": u(ks[5], (E, 3 * H), gb), "whh_b": u(ks[6], (H, 3 * H), gb),
        "bih_b": u(ks[7], (1, 3 * H), gb), "bhh_b": u(ks[8], (1, 3 * H), gb),
        # FFNN: Linear(2H -> E), Linear(E -> V_out), stored transposed
        "w1": u(ks[9], (2 * H, E), 1.0 / jnp.sqrt(2 * H)),
        "b1": u(ks[10], (1, E), 1.0 / jnp.sqrt(2 * H)),
        "w2": u(ks[11], (E, V_out), 1.0 / jnp.sqrt(E)),
        "b2": u(ks[12], (1, V_out), 1.0 / jnp.sqrt(E)),
    }


# ----------------------------------------------------------------------------
# One-time packing: fold embedding + r/z hidden biases into wtok, relayout
# gates into a single 128-lane block per direction, pad to TPU lanes.
# ----------------------------------------------------------------------------
def pack_params(params, *, hidden_dim, char_embed_dim, output_dim):
    H, E = hidden_dim, char_embed_dim
    assert 4 * H <= G, "packed-gate layout needs hidden_dim <= 32"
    emb = params["embedding"]                        # (V_in, E)
    V_in = emb.shape[0]
    Vp_in = _round_up(max(V_in, 8), G)
    Ep = _round_up(max(E, 8), G)
    Vp_out = _round_up(max(output_dim, 8), G)

    def relayout(w):
        """(K, 3H) in PyTorch gate order r|z|n -> (K, G) laid out n|z|r|..|z."""
        r, z, n = w[:, 0:H], w[:, H:2 * H], w[:, 2 * H:3 * H]
        out = jnp.zeros((w.shape[0], G), jnp.float32)
        out = out.at[:, 0:H].set(n)
        out = out.at[:, H:2 * H].set(z)
        out = out.at[:, 2 * H:3 * H].set(r)
        out = out.at[:, G - H:G].set(z)      # duplicate z: roll is +/-symmetric
        return out

    def fold_dir(wih, bih, bhh):
        # onehot(src) @ (emb@W_ih + b_ih) == emb[src]@W_ih + b_ih (exact), and
        # b_hh_r / b_hh_z add unconditionally so they fold too; b_hh_n must
        # stay in-loop because n = tanh(gi_n + r * (gh_n + b_hh_n)).
        tokw = relayout(jnp.dot(emb, wih) + bih)              # (V_in, G)
        brz = relayout(bhh).at[:, 0:H].set(0.0)               # drop the n block
        return tokw + brz

    wtok = jnp.concatenate(
        [fold_dir(params["wih_f"], params["bih_f"], params["bhh_f"]),
         fold_dir(params["wih_b"], params["bih_b"], params["bhh_b"])], axis=1)
    wtok = jnp.zeros((Vp_in, 2 * G), jnp.float32).at[:V_in].set(wtok)

    def pad_whh(w):   # (H, 3H) -> (G, G); zero rows [H:G) kill stale h lanes
        return jnp.zeros((G, G), jnp.float32).at[:H].set(relayout(w))

    def bhn(bhh):     # b_hh_n placed at lanes [0:H) (the n block)
        return jnp.zeros((1, G), jnp.float32).at[:, 0:H].set(bhh[:, 2 * H:3 * H])

    w1 = params["w1"]                                # (2H, E)
    w1p = jnp.zeros((2 * G, Ep), jnp.float32)
    w1p = w1p.at[0:H, 0:E].set(w1[0:H])              # forward h (lanes [0:H))
    w1p = w1p.at[G:G + H, 0:E].set(w1[H:2 * H])      # backward h
    b1p = jnp.zeros((1, Ep), jnp.float32).at[:, 0:E].set(params["b1"])
    w2p = jnp.zeros((Ep, Vp_out), jnp.float32).at[0:E, 0:output_dim].set(params["w2"])
    b2p = jnp.zeros((1, Vp_out), jnp.float32).at[:, 0:output_dim].set(params["b2"])

    bf16 = jnp.bfloat16
    return {
        "wtok": wtok.astype(bf16),
        "whh_f": pad_whh(params["whh_f"]).astype(bf16), "bhn_f": bhn(params["bhh_f"]),
        "whh_b": pad_whh(params["whh_b"]).astype(bf16), "bhn_b": bhn(params["bhh_b"]),
        "w1": w1p.astype(bf16), "b1": b1p,
        "w2": w2p.astype(bf16), "b2": b2p,
    }


# ----------------------------------------------------------------------------
# Wrapper: batch-parallel grid, weights VMEM-resident, padding sliced off
# ----------------------------------------------------------------------------
# Batch-tile cap: (T*B_TILE, 256) bf16 gi scratch + double-buffered tok/lens/
# out tiles must fit v7x's 64 MiB VMEM (128 MiB on v5e/v6e allows larger).
B_TILE_MAX = 256


@functools.partial(jax.jit, static_argnames=("output_dim", "hidden_dim"))
def vocab_corrector_forward(src, src_sz, packed, *, output_dim, hidden_dim):
    """src: (B, T) int32 tokens; src_sz: (B,) int32 unpadded lengths."""
    B, T = src.shape
    b_tile = min(_round_up(max(B, 8), 8), B_TILE_MAX)
    Bp = _round_up(max(B, 8), b_tile)
    n_tiles = Bp // b_tile

    # time-major tokens (T, Bp, 1); pad rows use token 0 / length 0.
    tok = jnp.zeros((T, Bp), jnp.int32).at[:, :B].set(src.T.astype(jnp.int32))
    tok = tok[:, :, None]
    lens = jnp.zeros((Bp, 1), jnp.int32).at[:B, 0].set(src_sz.astype(jnp.int32))

    Vp_out = packed["w2"].shape[1]

    def wspec(arr):  # weights: constant index_map -> DMA'd once, VMEM-resident
        return pl.BlockSpec(arr.shape, lambda i: (0,) * arr.ndim)

    kernel = functools.partial(gru_head_kernel, hidden=hidden_dim)
    out = pl.pallas_call(
        kernel,
        out_shape=jax.ShapeDtypeStruct((Bp, Vp_out), jnp.float32),
        grid_spec=pltpu.PrefetchScalarGridSpec(
            num_scalar_prefetch=0,
            grid=(n_tiles,),
            in_specs=[
                pl.BlockSpec((T, b_tile, 1), lambda i: (0, i, 0)),
                pl.BlockSpec((b_tile, 1), lambda i: (i, 0)),
                wspec(packed["wtok"]),
                wspec(packed["whh_f"]), wspec(packed["bhn_f"]),
                wspec(packed["whh_b"]), wspec(packed["bhn_b"]),
                wspec(packed["w1"]), wspec(packed["b1"]),
                wspec(packed["w2"]), wspec(packed["b2"]),
            ],
            out_specs=pl.BlockSpec((b_tile, Vp_out), lambda i: (i, 0)),
            scratch_shapes=[pltpu.VMEM((T * b_tile, 2 * G), jnp.bfloat16)],
        ),
        compiler_params=pltpu.CompilerParams(
            dimension_semantics=("parallel",),
            vmem_limit_bytes=32 * 1024 * 1024,
        ),
    )(tok, lens, packed["wtok"],
      packed["whh_f"], packed["bhn_f"], packed["whh_b"], packed["bhn_b"],
      packed["w1"], packed["b1"], packed["w2"], packed["b2"])
    return out[:B, :output_dim]


# ----------------------------------------------------------------------------
# Pure-JAX reference (f32) for a correctness check
# ----------------------------------------------------------------------------
def reference_forward(src, src_sz, params):
    B, T = src.shape
    H = params["whh_f"].shape[0]
    x = params["embedding"][src]                     # (B, T, E)
    lens = src_sz[:, None]

    def cell(x_t, h, wih, whh, bih, bhh):
        gi = x_t @ wih + bih
        gh = h @ whh + bhh
        r = jax.nn.sigmoid(gi[:, :H] + gh[:, :H])
        z = jax.nn.sigmoid(gi[:, H:2 * H] + gh[:, H:2 * H])
        n = jnp.tanh(gi[:, 2 * H:] + r * gh[:, 2 * H:])
        return (1.0 - z) * n + z * h

    h_f = jnp.zeros((B, H), jnp.float32)
    h_b = jnp.zeros((B, H), jnp.float32)
    for t in range(T):
        hn = cell(x[:, t], h_f, params["wih_f"], params["whh_f"],
                  params["bih_f"], params["bhh_f"])
        h_f = jnp.where(t < lens, hn, h_f)
    for t in range(T - 1, -1, -1):
        hn = cell(x[:, t], h_b, params["wih_b"], params["whh_b"],
                  params["bih_b"], params["bhh_b"])
        h_b = jnp.where(t < lens, hn, h_b)

    hid = jnp.concatenate([h_f, h_b], axis=1)
    y1 = hid @ params["w1"] + params["b1"]
    y1 = jnp.where(y1 > 0, y1, 0.01 * y1)
    return y1 @ params["w2"] + params["b2"]


# ----------------------------------------------------------------------------
if __name__ == "__main__":
    input_dim = 48        # char vocab size
    output_dim = 64       # word vocab size (classification targets)
    char_embed_dim = 32
    hidden_dim = 32
    batch, seq = 4, 8

    key = jax.random.PRNGKey(0)
    k_par, k_src = jax.random.split(key)

    params = init_params(k_par, input_dim, output_dim, char_embed_dim, hidden_dim)
    packed = pack_params(params, hidden_dim=hidden_dim,
                         char_embed_dim=char_embed_dim, output_dim=output_dim)

    src = jax.random.randint(k_src, (batch, seq), 0, input_dim, dtype=jnp.int32)
    src_sz = jnp.array([8, 5, 3, 6], dtype=jnp.int32)   # unpadded lengths

    out = vocab_corrector_forward(src, src_sz, packed,
                                  output_dim=output_dim, hidden_dim=hidden_dim)
    out = jax.block_until_ready(out)

    ref = reference_forward(src, src_sz, params)

    assert out.shape == (batch, output_dim)
    assert jnp.all(jnp.isfinite(out))
    assert jnp.allclose(out, ref, atol=5e-2, rtol=5e-2), \
        float(jnp.max(jnp.abs(out - ref)))
    print("KERNEL_OK")
</pallas_src>

<mosaic_0001>
module attributes {stable_mosaic.version = 11 : i64} {
  func.func @gru_head_kernel(%arg0: i32, %arg1: memref<8x8x1xi32, #tpu.memory_space<vmem>>, %arg2: memref<8x1xi32, #tpu.memory_space<vmem>>, %arg3: memref<128x256xbf16, #tpu.memory_space<vmem>>, %arg4: memref<128x128xbf16, #tpu.memory_space<vmem>>, %arg5: memref<1x128xf32, #tpu.memory_space<vmem>>, %arg6: memref<128x128xbf16, #tpu.memory_space<vmem>>, %arg7: memref<1x128xf32, #tpu.memory_space<vmem>>, %arg8: memref<256x128xbf16, #tpu.memory_space<vmem>>, %arg9: memref<1x128xf32, #tpu.memory_space<vmem>>, %arg10: memref<128x128xbf16, #tpu.memory_space<vmem>>, %arg11: memref<1x128xf32, #tpu.memory_space<vmem>>, %arg12: memref<8x128xf32, #tpu.memory_space<vmem>>, %arg13: memref<64x256xbf16, #tpu.memory_space<vmem>>) attributes {dimension_semantics = [#tpu.dimension_semantics<parallel>], iteration_bounds = array<i64: 1>, scalar_prefetch = 0 : i64, scratch_operands = 1 : i64, tpu.core_type = #tpu.core_type<tc>, window_params = [{transform_indices = @transform_0, window_bounds = array<i64: 8, 8, 1>}, {transform_indices = @transform_1, window_bounds = array<i64: 8, 1>}, {pipeline_mode = #tpu.pipeline_mode<synchronous>, transform_indices = @transform_2, window_bounds = array<i64: 128, 256>}, {pipeline_mode = #tpu.pipeline_mode<synchronous>, transform_indices = @transform_3, window_bounds = array<i64: 128, 128>}, {pipeline_mode = #tpu.pipeline_mode<synchronous>, transform_indices = @transform_4, window_bounds = array<i64: 1, 128>}, {pipeline_mode = #tpu.pipeline_mode<synchronous>, transform_indices = @transform_5, window_bounds = array<i64: 128, 128>}, {pipeline_mode = #tpu.pipeline_mode<synchronous>, transform_indices = @transform_6, window_bounds = array<i64: 1, 128>}, {pipeline_mode = #tpu.pipeline_mode<synchronous>, transform_indices = @transform_7, window_bounds = array<i64: 256, 128>}, {pipeline_mode = #tpu.pipeline_mode<synchronous>, transform_indices = @transform_8, window_bounds = array<i64: 1, 128>}, {pipeline_mode = #tpu.pipeline_mode<synchronous>, transform_indices = @transform_9, window_bounds = array<i64: 128, 128>}, {pipeline_mode = #tpu.pipeline_mode<synchronous>, transform_indices = @transform_10, window_bounds = array<i64: 1, 128>}, {transform_indices = @transform_11, window_bounds = array<i64: 8, 128>}]} {
    %c0 = arith.constant 0 : index
    %c0_0 = arith.constant 0 : index
    %c0_1 = arith.constant 0 : index
    %0 = vector.load %arg1[%c0, %c0_0, %c0_1] : memref<8x8x1xi32, #tpu.memory_space<vmem>>, vector<8x8x1xi32>
    %1 = tpu.iota {dimensions = array<i32: 2>} : vector<8x8x128xi32>
    %2 = vector.broadcast %0 : vector<8x8x1xi32> to vector<8x8x128xi32>
    %3 = arith.cmpi eq, %1, %2 : vector<8x8x128xi32>
    %4 = vector.shape_cast %3 : vector<8x8x128xi1> to vector<64x128xi1>
    %5 = arith.extui %4 : vector<64x128xi1> to vector<64x128xi32>
    %6 = arith.sitofp %5 : vector<64x128xi32> to vector<64x128xf32>
    %7 = arith.truncf %6 : vector<64x128xf32> to vector<64x128xbf16>
    %c0_2 = arith.constant 0 : index
    %c0_3 = arith.constant 0 : index
    %8 = vector.load %arg3[%c0_2, %c0_3] : memref<128x256xbf16, #tpu.memory_space<vmem>>, vector<128x256xbf16>
    %cst = arith.constant dense<0.000000e+00> : vector<64x256xf32>
    %9 = tpu.matmul %7, %8, %cst {dimension_numbers = #tpu.dot_dimension_numbers<[1], [0], [0], [1], [0, 0, 1, 1], [], []>} : vector<64x128xbf16>, vector<128x256xbf16>, vector<64x256xf32> -> vector<64x256xf32>
    %10 = arith.truncf %9 : vector<64x256xf32> to vector<64x256xbf16>
    %c0_4 = arith.constant 0 : index
    %c0_5 = arith.constant 0 : index
    %11 = vector.load %arg13[%c0_4, %c0_5] : memref<64x256xbf16, #tpu.memory_space<vmem>>, vector<64x256xbf16>
    tpu.vector_store %arg13[%c0_4, %c0_5], %10 {strides = array<i32>} : memref<64x256xbf16, #tpu.memory_space<vmem>>, vector<64x256xbf16>,
    %c0_6 = arith.constant 0 : index
    %c0_7 = arith.constant 0 : index
    %12 = vector.load %arg2[%c0_6, %c0_7] : memref<8x1xi32, #tpu.memory_space<vmem>>, vector<8x1xi32>
    %cst_8 = arith.constant 0.000000e+00 : f32
    %13 = vector.broadcast %cst_8 : f32 to vector<8x128xf32>
    %cst_9 = arith.constant 0.000000e+00 : f32
    %14 = vector.broadcast %cst_9 : f32 to vector<8x128xf32>
    %c0_10 = arith.constant 0 : index
    %c0_11 = arith.constant 0 : index
    %15 = vector.load %arg13[%c0_10, %c0_11] : memref<64x256xbf16, #tpu.memory_space<vmem>>, vector<8x128xbf16>
    %16 = arith.extf %15 : vector<8x128xbf16> to vector<8x128xf32>
    %c56 = arith.constant 56 : index
    %c128 = arith.constant 128 : index
    %17 = vector.load %arg13[%c56, %c128] : memref<64x256xbf16, #tpu.memory_space<vmem>>, vector<8x128xbf16>
    %18 = arith.extf %17 : vector<8x128xbf16> to vector<8x128xf32>
    %c0_i32 = arith.constant 0 : i32
    %19 = vector.broadcast %c0_i32 : i32 to vector<8x1xi32>
    %20 = arith.cmpi sgt, %12, %19 : vector<8x1xi32>
    %21 = arith.truncf %13 : vector<8x128xf32> to vector<8x128xbf16>
    %c0_12 = arith.constant 0 : index
    %c0_13 = arith.constant 0 : index
    %22 = vector.load %arg4[%c0_12, %c0_13] : memref<128x128xbf16, #tpu.memory_space<vmem>>, vector<128x128xbf16>
    %cst_14 = arith.constant dense<0.000000e+00> : vector<8x128xf32>
    %23 = tpu.matmul %21, %22, %cst_14 {dimension_numbers = #tpu.dot_dimension_numbers<[1], [0], [0], [1], [0, 0, 1, 1], [], []>} : vector<8x128xbf16>, vector<128x128xbf16>, vector<8x128xf32> -> vector<8x128xf32>
    %c0_15 = arith.constant 0 : index
    %c0_16 = arith.constant 0 : index
    %24 = vector.load %arg5[%c0_15, %c0_16] : memref<1x128xf32, #tpu.memory_space<vmem>>, vector<1x128xf32>
    %25 = vector.broadcast %24 : vector<1x128xf32> to vector<8x128xf32>
    %26 = arith.addf %23, %25 : vector<8x128xf32>
    %27 = arith.addf %16, %26 : vector<8x128xf32>
    %28 = arith.negf %27 : vector<8x128xf32>
    %29 = math.exp %28 : vector<8x128xf32>
    %cst_17 = arith.constant 1.000000e+00 : f32
    %30 = vector.broadcast %cst_17 : f32 to vector<8x128xf32>
    %31 = arith.addf %30, %29 : vector<8x128xf32>
    %32 = arith.divf %30, %31 : vector<8x128xf32>
    %c64_i32 = arith.constant 64 : i32
    %33 = tpu.dynamic_rotate %32 by %c64_i32 dim 1 : vector<8x128xf32>, i32 -> vector<8x128xf32>
    %c96_i32 = arith.constant 96 : i32
    %34 = tpu.dynamic_rotate %32 by %c96_i32 dim 1 : vector<8x128xf32>, i32 -> vector<8x128xf32>
    %35 = arith.mulf %33, %26 : vector<8x128xf32>
    %36 = arith.addf %16, %35 : vector<8x128xf32>
    %37 = math.tanh %36 : vector<8x128xf32>
    %cst_18 = arith.constant 1.000000e+00 : f32
    %38 = vector.broadcast %cst_18 : f32 to vector<8x128xf32>
    %39 = arith.subf %38, %34 : vector<8x128xf32>
    %40 = arith.mulf %39, %37 : vector<8x128xf32>
    %41 = arith.mulf %34, %13 : vector<8x128xf32>
    %42 = arith.addf %40, %41 : vector<8x128xf32>
    %43 = vector.shape_cast %20 : vector<8x1xi1> to vector<8x1xi1>
    %44 = vector.broadcast %43 : vector<8x1xi1> to vector<8x128xi1>
    %45 = arith.select %44, %42, %13 : vector<8x128xi1>, vector<8x128xf32>
    %c7_i32 = arith.constant 7 : i32
    %46 = vector.broadcast %c7_i32 : i32 to vector<8x1xi32>
    %47 = arith.cmpi sgt, %12, %46 : vector<8x1xi32>
    %48 = arith.truncf %14 : vector<8x128xf32> to vector<8x128xbf16>
    %c0_19 = arith.constant 0 : index
    %c0_20 = arith.constant 0 : index
    %49 = vector.load %arg6[%c0_19, %c0_20] : memref<128x128xbf16, #tpu.memory_space<vmem>>, vector<128x128xbf16>
    %cst_21 = arith.constant dense<0.000000e+00> : vector<8x128xf32>
    %50 = tpu.matmul %48, %49, %cst_21 {dimension_numbers = #tpu.dot_dimension_numbers<[1], [0], [0], [1], [0, 0, 1, 1], [], []>} : vector<8x128xbf16>, vector<128x128xbf16>, vector<8x128xf32> -> vector<8x128xf32>
    %c0_22 = arith.constant 0 : index
    %c0_23 = arith.constant 0 : index
    %51 = vector.load %arg7[%c0_22, %c0_23] : memref<1x128xf32, #tpu.memory_space<vmem>>, vector<1x128xf32>
    %52 = vector.broadcast %51 : vector<1x128xf32> to vector<8x128xf32>
    %53 = arith.addf %50, %52 : vector<8x128xf32>
    %54 = arith.addf %18, %53 : vector<8x128xf32>
    %55 = arith.negf %54 : vector<8x128xf32>
    %56 = math.exp %55 : vector<8x128xf32>
    %cst_24 = arith.constant 1.000000e+00 : f32
    %57 = vector.broadcast %cst_24 : f32 to vector<8x128xf32>
    %58 = arith.addf %57, %56 : vector<8x128xf32>
    %59 = arith.divf %57, %58 : vector<8x128xf32>
    %c64_i32_25 = arith.constant 64 : i32
    %60 = tpu.dynamic_rotate %59 by %c64_i32_25 dim 1 : vector<8x128xf32>, i32 -> vector<8x128xf32>
    %c96_i32_26 = arith.constant 96 : i32
    %61 = tpu.dynamic_rotate %59 by %c96_i32_26 dim 1 : vector<8x128xf32>, i32 -> vector<8x128xf32>
    %62 = arith.mulf %60, %53 : vector<8x128xf32>
    %63 = arith.addf %18, %62 : vector<8x128xf32>
    %64 = math.tanh %63 : vector<8x128xf32>
    %cst_27 = arith.constant 1.000000e+00 : f32
    %65 = vector.broadcast %cst_27 : f32 to vector<8x128xf32>
    %66 = arith.subf %65, %61 : vector<8x128xf32>
    %67 = arith.mulf %66, %64 : vector<8x128xf32>
    %68 = arith.mulf %61, %14 : vector<8x128xf32>
    %69 = arith.addf %67, %68 : vector<8x128xf32>
    %70 = vector.shape_cast %47 : vector<8x1xi1> to vector<8x1xi1>
    %71 = vector.broadcast %70 : vector<8x1xi1> to vector<8x128xi1>
    %72 = arith.select %71, %69, %14 : vector<8x128xi1>, vector<8x128xf32>
    %c8 = arith.constant 8 : index
    %c0_28 = arith.constant 0 : index
    %73 = vector.load %arg13[%c8, %c0_28] : memref<64x256xbf16, #tpu.memory_space<vmem>>, vector<8x128xbf16>
    %74 = arith.extf %73 : vector<8x128xbf16> to vector<8x128xf32>
    %c48 = arith.constant 48 : index
    %c128_29 = arith.constant 128 : index
    %75 = vector.load %arg13[%c48, %c128_29] : memref<64x256xbf16, #tpu.memory_space<vmem>>, vector<8x128xbf16>
    %76 = arith.extf %75 : vector<8x128xbf16> to vector<8x128xf32>
    %c1_i32 = arith.constant 1 : i32
    %77 = vector.broadcast %c1_i32 : i32 to vector<8x1xi32>
    %78 = arith.cmpi sgt, %12, %77 : vector<8x1xi32>
    %79 = arith.truncf %45 : vector<8x128xf32> to vector<8x128xbf16>
    %c0_30 = arith.constant 0 : index
    %c0_31 = arith.constant 0 : index
    %80 = vector.load %arg4[%c0_30, %c0_31] : memref<128x128xbf16, #tpu.memory_space<vmem>>, vector<128x128xbf16>
    %cst_32 = arith.constant dense<0.000000e+00> : vector<8x128xf32>
    %81 = tpu.matmul %79, %80, %cst_32 {dimension_numbers = #tpu.dot_dimension_numbers<[1], [0], [0], [1], [0, 0, 1, 1], [], []>} : vector<8x128xbf16>, vector<128x128xbf16>, vector<8x128xf32> -> vector<8x128xf32>
    %c0_33 = arith.constant 0 : index
    %c0_34 = arith.constant 0 : index
    %82 = vector.load %arg5[%c0_33, %c0_34] : memref<1x128xf32, #tpu.memory_space<vmem>>, vector<1x128xf32>
    %83 = vector.broadcast %82 : vector<1x128xf32> to vector<8x128xf32>
    %84 = arith.addf %81, %83 : vector<8x128xf32>
    %85 = arith.addf %74, %84 : vector<8x128xf32>
    %86 = arith.negf %85 : vector<8x128xf32>
    %87 = math.exp %86 : vector<8x128xf32>
    %cst_35 = arith.constant 1.000000e+00 : f32
    %88 = vector.broadcast %cst_35 : f32 to vector<8x128xf32>
    %89 = arith.addf %88, %87 : vector<8x128xf32>
    %90 = arith.divf %88, %89 : vector<8x128xf32>
    %c64_i32_36 = arith.constant 64 : i32
    %91 = tpu.dynamic_rotate %90 by %c64_i32_36 dim 1 : vector<8x128xf32>, i32 -> vector<8x128xf32>
    %c96_i32_37 = arith.constant 96 : i32
    %92 = tpu.dynamic_rotate %90 by %c96_i32_37 dim 1 : vector<8x128xf32>, i32 -> vector<8x128xf32>
    %93 = arith.mulf %91, %84 : vector<8x128xf32>
    %94 = arith.addf %74, %93 : vector<8x128xf32>
    %95 = math.tanh %94 : vector<8x128xf32>
    %cst_38 = arith.constant 1.000000e+00 : f32
    %96 = vector.broadcast %cst_38 : f32 to vector<8x128xf32>
    %97 = arith.subf %96, %92 : vector<8x128xf32>
    %98 = arith.mulf %97, %95 : vector<8x128xf32>
    %99 = arith.mulf %92, %45 : vector<8x128xf32>
    %100 = arith.addf %98, %99 : vector<8x128xf32>
    %101 = vector.shape_cast %78 : vector<8x1xi1> to vector<8x1xi1>
    %102 = vector.broadcast %101 : vector<8x1xi1> to vector<8x128xi1>
    %103 = arith.select %102, %100, %45 : vector<8x128xi1>, vector<8x128xf32>
    %c6_i32 = arith.constant 6 : i32
    %104 = vector.broadcast %c6_i32 : i32 to vector<8x1xi32>
    %105 = arith.cmpi sgt, %12, %104 : vector<8x1xi32>
    %106 = arith.truncf %72 : vector<8x128xf32> to vector<8x128xbf16>
    %c0_39 = arith.constant 0 : index
    %c0_40 = arith.constant 0 : index
    %107 = vector.load %arg6[%c0_39, %c0_40] : memref<128x128xbf16, #tpu.memory_space<vmem>>, vector<128x128xbf16>
    %cst_41 = arith.constant dense<0.000000e+00> : vector<8x128xf32>
    %108 = tpu.matmul %106, %107, %cst_41 {dimension_numbers = #tpu.dot_dimension_numbers<[1], [0], [0], [1], [0, 0, 1, 1], [], []>} : vector<8x128xbf16>, vector<128x128xbf16>, vector<8x128xf32> -> vector<8x128xf32>
    %c0_42 = arith.constant 0 : index
    %c0_43 = arith.constant 0 : index
    %109 = vector.load %arg7[%c0_42, %c0_43] : memref<1x128xf32, #tpu.memory_space<vmem>>, vector<1x128xf32>
    %110 = vector.broadcast %109 : vector<1x128xf32> to vector<8x128xf32>
    %111 = arith.addf %108, %110 : vector<8x128xf32>
    %112 = arith.addf %76, %111 : vector<8x128xf32>
    %113 = arith.negf %112 : vector<8x128xf32>
    %114 = math.exp %113 : vector<8x128xf32>
    %cst_44 = arith.constant 1.000000e+00 : f32
    %115 = vector.broadcast %cst_44 : f32 to vector<8x128xf32>
    %116 = arith.addf %115, %114 : vector<8x128xf32>
    %117 = arith.divf %115, %116 : vector<8x128xf32>
    %c64_i32_45 = arith.constant 64 : i32
    %118 = tpu.dynamic_rotate %117 by %c64_i32_45 dim 1 : vector<8x128xf32>, i32 -> vector<8x128xf32>
    %c96_i32_46 = arith.constant 96 : i32
    %119 = tpu.dynamic_rotate %117 by %c96_i32_46 dim 1 : vector<8x128xf32>, i32 -> vector<8x128xf32>
    %120 = arith.mulf %118, %111 : vector<8x128xf32>
    %121 = arith.addf %76, %120 : vector<8x128xf32>
    %122 = math.tanh %121 : vector<8x128xf32>
    %cst_47 = arith.constant 1.000000e+00 : f32
    %123 = vector.broadcast %cst_47 : f32 to vector<8x128xf32>
    %124 = arith.subf %123, %119 : vector<8x128xf32>
    %125 = arith.mulf %124, %122 : vector<8x128xf32>
    %126 = arith.mulf %119, %72 : vector<8x128xf32>
    %127 = arith.addf %125, %126 : vector<8x128xf32>
    %128 = vector.shape_cast %105 : vector<8x1xi1> to vector<8x1xi1>
    %129 = vector.broadcast %128 : vector<8x1xi1> to vector<8x128xi1>
    %130 = arith.select %129, %127, %72 : vector<8x128xi1>, vector<8x128xf32>
    %c16 = arith.constant 16 : index
    %c0_48 = arith.constant 0 : index
    %131 = vector.load %arg13[%c16, %c0_48] : memref<64x256xbf16, #tpu.memory_space<vmem>>, vector<8x128xbf16>
    %132 = arith.extf %131 : vector<8x128xbf16> to vector<8x128xf32>
    %c40 = arith.constant 40 : index
    %c128_49 = arith.constant 128 : index
    %133 = vector.load %arg13[%c40, %c128_49] : memref<64x256xbf16, #tpu.memory_space<vmem>>, vector<8x128xbf16>
    %134 = arith.extf %133 : vector<8x128xbf16> to vector<8x128xf32>
    %c2_i32 = arith.constant 2 : i32
    %135 = vector.broadcast %c2_i32 : i32 to vector<8x1xi32>
    %136 = arith.cmpi sgt, %12, %135 : vector<8x1xi32>
    %137 = arith.truncf %103 : vector<8x128xf32> to vector<8x128xbf16>
    %c0_50 = arith.constant 0 : index
    %c0_51 = arith.constant 0 : index
    %138 = vector.load %arg4[%c0_50, %c0_51] : memref<128x128xbf16, #tpu.memory_space<vmem>>, vector<128x128xbf16>
    %cst_52 = arith.constant dense<0.000000e+00> : vector<8x128xf32>
    %139 = tpu.matmul %137, %138, %cst_52 {dimension_numbers = #tpu.dot_dimension_numbers<[1], [0], [0], [1], [0, 0, 1, 1], [], []>} : vector<8x128xbf16>, vector<128x128xbf16>, vector<8x128xf32> -> vector<8x128xf32>
    %c0_53 = arith.constant 0 : index
    %c0_54 = arith.constant 0 : index
    %140 = vector.load %arg5[%c0_53, %c0_54] : memref<1x128xf32, #tpu.memory_space<vmem>>, vector<1x128xf32>
    %141 = vector.broadcast %140 : vector<1x128xf32> to vector<8x128xf32>
    %142 = arith.addf %139, %141 : vector<8x128xf32>
    %143 = arith.addf %132, %142 : vector<8x128xf32>
    %144 = arith.negf %143 : vector<8x128xf32>
    %145 = math.exp %144 : vector<8x128xf32>
    %cst_55 = arith.constant 1.000000e+00 : f32
    %146 = vector.broadcast %cst_55 : f32 to vector<8x128xf32>
    %147 = arith.addf %146, %145 : vector<8x128xf32>
    %148 = arith.divf %146, %147 : vector<8x128xf32>
    %c64_i32_56 = arith.constant 64 : i32
    %149 = tpu.dynamic_rotate %148 by %c64_i32_56 dim 1 : vector<8x128xf32>, i32 -> vector<8x128xf32>
    %c96_i32_57 = arith.constant 96 : i32
    %150 = tpu.dynamic_rotate %148 by %c96_i32_57 dim 1 : vector<8x128xf32>, i32 -> vector<8x128xf32>
    %151 = arith.mulf %149, %142 : vector<8x128xf32>
    %152 = arith.addf %132, %151 : vector<8x128xf32>
    %153 = math.tanh %152 : vector<8x128xf32>
    %cst_58 = arith.constant 1.000000e+00 : f32
    %154 = vector.broadcast %cst_58 : f32 to vector<8x128xf32>
    %155 = arith.subf %154, %150 : vector<8x128xf32>
    %156 = arith.mulf %155, %153 : vector<8x128xf32>
    %157 = arith.mulf %150, %103 : vector<8x128xf32>
    %158 = arith.addf %156, %157 : vector<8x128xf32>
    %159 = vector.shape_cast %136 : vector<8x1xi1> to vector<8x1xi1>
    %160 = vector.broadcast %159 : vector<8x1xi1> to vector<8x128xi1>
    %161 = arith.select %160, %158, %103 : vector<8x128xi1>, vector<8x128xf32>
    %c5_i32 = arith.constant 5 : i32
    %162 = vector.broadcast %c5_i32 : i32 to vector<8x1xi32>
    %163 = arith.cmpi sgt, %12, %162 : vector<8x1xi32>
    %164 = arith.truncf %130 : vector<8x128xf32> to vector<8x128xbf16>
    %c0_59 = arith.constant 0 : index
    %c0_60 = arith.constant 0 : index
    %165 = vector.load %arg6[%c0_59, %c0_60] : memref<128x128xbf16, #tpu.memory_space<vmem>>, vector<128x128xbf16>
    %cst_61 = arith.constant dense<0.000000e+00> : vector<8x128xf32>
    %166 = tpu.matmul %164, %165, %cst_61 {dimension_numbers = #tpu.dot_dimension_numbers<[1], [0], [0], [1], [0, 0, 1, 1], [], []>} : vector<8x128xbf16>, vector<128x128xbf16>, vector<8x128xf32> -> vector<8x128xf32>
    %c0_62 = arith.constant 0 : index
    %c0_63 = arith.constant 0 : index
    %167 = vector.load %arg7[%c0_62, %c0_63] : memref<1x128xf32, #tpu.memory_space<vmem>>, vector<1x128xf32>
    %168 = vector.broadcast %167 : vector<1x128xf32> to vector<8x128xf32>
    %169 = arith.addf %166, %168 : vector<8x128xf32>
    %170 = arith.addf %134, %169 : vector<8x128xf32>
    %171 = arith.negf %170 : vector<8x128xf32>
    %172 = math.exp %171 : vector<8x128xf32>
    %cst_64 = arith.constant 1.000000e+00 : f32
    %173 = vector.broadcast %cst_64 : f32 to vector<8x128xf32>
    %174 = arith.addf %173, %172 : vector<8x128xf32>
    %175 = arith.divf %173, %174 : vector<8x128xf32>
    %c64_i32_65 = arith.constant 64 : i32
    %176 = tpu.dynamic_rotate %175 by %c64_i32_65 dim 1 : vector<8x128xf32>, i32 -> vector<8x128xf32>
    %c96_i32_66 = arith.constant 96 : i32
    %177 = tpu.dynamic_rotate %175 by %c96_i32_66 dim 1 : vector<8x128xf32>, i32 -> vector<8x128xf32>
    %178 = arith.mulf %176, %169 : vector<8x128xf32>
    %179 = arith.addf %134, %178 : vector<8x128xf32>
    %180 = math.tanh %179 : vector<8x128xf32>
    %cst_67 = arith.constant 1.000000e+00 : f32
    %181 = vector.broadcast %cst_67 : f32 to vector<8x128xf32>
    %182 = arith.subf %181, %177 : vector<8x128xf32>
    %183 = arith.mulf %182, %180 : vector<8x128xf32>
    %184 = arith.mulf %177, %130 : vector<8x128xf32>
    %185 = arith.addf %183, %184 : vector<8x128xf32>
    %186 = vector.shape_cast %163 : vector<8x1xi1> to vector<8x1xi1>
    %187 = vector.broadcast %186 : vector<8x1xi1> to vector<8x128xi1>
    %188 = arith.select %187, %185, %130 : vector<8x128xi1>, vector<8x128xf32>
    %c24 = arith.constant 24 : index
    %c0_68 = arith.constant 0 : index
    %189 = vector.load %arg13[%c24, %c0_68] : memref<64x256xbf16, #tpu.memory_space<vmem>>, vector<8x128xbf16>
    %190 = arith.extf %189 : vector<8x128xbf16> to vector<8x128xf32>
    %c32 = arith.constant 32 : index
    %c128_69 = arith.constant 128 : index
    %191 = vector.load %arg13[%c32, %c128_69] : memref<64x256xbf16, #tpu.memory_space<vmem>>, vector<8x128xbf16>
    %192 = arith.extf %191 : vector<8x128xbf16> to vector<8x128xf32>
    %c3_i32 = arith.constant 3 : i32
    %193 = vector.broadcast %c3_i32 : i32 to vector<8x1xi32>
    %194 = arith.cmpi sgt, %12, %193 : vector<8x1xi32>
    %195 = arith.truncf %161 : vector<8x128xf32> to vector<8x128xbf16>
    %c0_70 = arith.constant 0 : index
    %c0_71 = arith.constant 0 : index
    %196 = vector.load %arg4[%c0_70, %c0_71] : memref<128x128xbf16, #tpu.memory_space<vmem>>, vector<128x128xbf16>
    %cst_72 = arith.constant dense<0.000000e+00> : vector<8x128xf32>
    %197 = tpu.matmul %195, %196, %cst_72 {dimension_numbers = #tpu.dot_dimension_numbers<[1], [0], [0], [1], [0, 0, 1, 1], [], []>} : vector<8x128xbf16>, vector<128x128xbf16>, vector<8x128xf32> -> vector<8x128xf32>
    %c0_73 = arith.constant 0 : index
    %c0_74 = arith.constant 0 : index
    %198 = vector.load %arg5[%c0_73, %c0_74] : memref<1x128xf32, #tpu.memory_space<vmem>>, vector<1x128xf32>
    %199 = vector.broadcast %198 : vector<1x128xf32> to vector<8x128xf32>
    %200 = arith.addf %197, %199 : vector<8x128xf32>
    %201 = arith.addf %190, %200 : vector<8x128xf32>
    %202 = arith.negf %201 : vector<8x128xf32>
    %203 = math.exp %202 : vector<8x128xf32>
    %cst_75 = arith.constant 1.000000e+00 : f32
    %204 = vector.broadcast %cst_75 : f32 to vector<8x128xf32>
    %205 = arith.addf %204, %203 : vector<8x128xf32>
    %206 = arith.divf %204, %205 : vector<8x128xf32>
    %c64_i32_76 = arith.constant 64 : i32
    %207 = tpu.dynamic_rotate %206 by %c64_i32_76 dim 1 : vector<8x128xf32>, i32 -> vector<8x128xf32>
    %c96_i32_77 = arith.constant 96 : i32
    %208 = tpu.dynamic_rotate %206 by %c96_i32_77 dim 1 : vector<8x128xf32>, i32 -> vector<8x128xf32>
    %209 = arith.mulf %207, %200 : vector<8x128xf32>
    %210 = arith.addf %190, %209 : vector<8x128xf32>
    %211 = math.tanh %210 : vector<8x128xf32>
    %cst_78 = arith.constant 1.000000e+00 : f32
    %212 = vector.broadcast %cst_78 : f32 to vector<8x128xf32>
    %213 = arith.subf %212, %208 : vector<8x128xf32>
    %214 = arith.mulf %213, %211 : vector<8x128xf32>
    %215 = arith.mulf %208, %161 : vector<8x128xf32>
    %216 = arith.addf %214, %215 : vector<8x128xf32>
    %217 = vector.shape_cast %194 : vector<8x1xi1> to vector<8x1xi1>
    %218 = vector.broadcast %217 : vector<8x1xi1> to vector<8x128xi1>
    %219 = arith.select %218, %216, %161 : vector<8x128xi1>, vector<8x128xf32>
    %c4_i32 = arith.constant 4 : i32
    %220 = vector.broadcast %c4_i32 : i32 to vector<8x1xi32>
    %221 = arith.cmpi sgt, %12, %220 : vector<8x1xi32>
    %222 = arith.truncf %188 : vector<8x128xf32> to vector<8x128xbf16>
    %c0_79 = arith.constant 0 : index
    %c0_80 = arith.constant 0 : index
    %223 = vector.load %arg6[%c0_79, %c0_80] : memref<128x128xbf16, #tpu.memory_space<vmem>>, vector<128x128xbf16>
    %cst_81 = arith.constant dense<0.000000e+00> : vector<8x128xf32>
    %224 = tpu.matmul %222, %223, %cst_81 {dimension_numbers = #tpu.dot_dimension_numbers<[1], [0], [0], [1], [0, 0, 1, 1], [], []>} : vector<8x128xbf16>, vector<128x128xbf16>, vector<8x128xf32> -> vector<8x128xf32>
    %c0_82 = arith.constant 0 : index
    %c0_83 = arith.constant 0 : index
    %225 = vector.load %arg7[%c0_82, %c0_83] : memref<1x128xf32, #tpu.memory_space<vmem>>, vector<1x128xf32>
    %226 = vector.broadcast %225 : vector<1x128xf32> to vector<8x128xf32>
    %227 = arith.addf %224, %226 : vector<8x128xf32>
    %228 = arith.addf %192, %227 : vector<8x128xf32>
    %229 = arith.negf %228 : vector<8x128xf32>
    %230 = math.exp %229 : vector<8x128xf32>
    %cst_84 = arith.constant 1.000000e+00 : f32
    %231 = vector.broadcast %cst_84 : f32 to vector<8x128xf32>
    %232 = arith.addf %231, %230 : vector<8x128xf32>
    %233 = arith.divf %231, %232 : vector<8x128xf32>
    %c64_i32_85 = arith.constant 64 : i32
    %234 = tpu.dynamic_rotate %233 by %c64_i32_85 dim 1 : vector<8x128xf32>, i32 -> vector<8x128xf32>
    %c96_i32_86 = arith.constant 96 : i32
    %235 = tpu.dynamic_rotate %233 by %c96_i32_86 dim 1 : vector<8x128xf32>, i32 -> vector<8x128xf32>
    %236 = arith.mulf %234, %227 : vector<8x128xf32>
    %237 = arith.addf %192, %236 : vector<8x128xf32>
    %238 = math.tanh %237 : vector<8x128xf32>
    %cst_87 = arith.constant 1.000000e+00 : f32
    %239 = vector.broadcast %cst_87 : f32 to vector<8x128xf32>
    %240 = arith.subf %239, %235 : vector<8x128xf32>
    %241 = arith.mulf %240, %238 : vector<8x128xf32>
    %242 = arith.mulf %235, %188 : vector<8x128xf32>
    %243 = arith.addf %241, %242 : vector<8x128xf32>
    %244 = vector.shape_cast %221 : vector<8x1xi1> to vector<8x1xi1>
    %245 = vector.broadcast %244 : vector<8x1xi1> to vector<8x128xi1>
    %246 = arith.select %245, %243, %188 : vector<8x128xi1>, vector<8x128xf32>
    %c32_88 = arith.constant 32 : index
    %c0_89 = arith.constant 0 : index
    %247 = vector.load %arg13[%c32_88, %c0_89] : memref<64x256xbf16, #tpu.memory_space<vmem>>, vector<8x128xbf16>
    %248 = arith.extf %247 : vector<8x128xbf16> to vector<8x128xf32>
    %c24_90 = arith.constant 24 : index
    %c128_91 = arith.constant 128 : index
    %249 = vector.load %arg13[%c24_90, %c128_91] : memref<64x256xbf16, #tpu.memory_space<vmem>>, vector<8x128xbf16>
    %250 = arith.extf %249 : vector<8x128xbf16> to vector<8x128xf32>
    %c4_i32_92 = arith.constant 4 : i32
    %251 = vector.broadcast %c4_i32_92 : i32 to vector<8x1xi32>
    %252 = arith.cmpi sgt, %12, %251 : vector<8x1xi32>
    %253 = arith.truncf %219 : vector<8x128xf32> to vector<8x128xbf16>
    %c0_93 = arith.constant 0 : index
    %c0_94 = arith.constant 0 : index
    %254 = vector.load %arg4[%c0_93, %c0_94] : memref<128x128xbf16, #tpu.memory_space<vmem>>, vector<128x128xbf16>
    %cst_95 = arith.constant dense<0.000000e+00> : vector<8x128xf32>
    %255 = tpu.matmul %253, %254, %cst_95 {dimension_numbers = #tpu.dot_dimension_numbers<[1], [0], [0], [1], [0, 0, 1, 1], [], []>} : vector<8x128xbf16>, vector<128x128xbf16>, vector<8x128xf32> -> vector<8x128xf32>
    %c0_96 = arith.constant 0 : index
    %c0_97 = arith.constant 0 : index
    %256 = vector.load %arg5[%c0_96, %c0_97] : memref<1x128xf32, #tpu.memory_space<vmem>>, vector<1x128xf32>
    %257 = vector.broadcast %256 : vector<1x128xf32> to vector<8x128xf32>
    %258 = arith.addf %255, %257 : vector<8x128xf32>
    %259 = arith.addf %248, %258 : vector<8x128xf32>
    %260 = arith.negf %259 : vector<8x128xf32>
    %261 = math.exp %260 : vector<8x128xf32>
    %cst_98 = arith.constant 1.000000e+00 : f32
    %262 = vector.broadcast %cst_98 : f32 to vector<8x128xf32>
    %263 = arith.addf %262, %261 : vector<8x128xf32>
    %264 = arith.divf %262, %263 : vector<8x128xf32>
    %c64_i32_99 = arith.constant 64 : i32
    %265 = tpu.dynamic_rotate %264 by %c64_i32_99 dim 1 : vector<8x128xf32>, i32 -> vector<8x128xf32>
    %c96_i32_100 = arith.constant 96 : i32
    %266 = tpu.dynamic_rotate %264 by %c96_i32_100 dim 1 : vector<8x128xf32>, i32 -> vector<8x128xf32>
    %267 = arith.mulf %265, %258 : vector<8x128xf32>
    %268 = arith.addf %248, %267 : vector<8x128xf32>
    %269 = math.tanh %268 : vector<8x128xf32>
    %cst_101 = arith.constant 1.000000e+00 : f32
    %270 = vector.broadcast %cst_101 : f32 to vector<8x128xf32>
    %271 = arith.subf %270, %266 : vector<8x128xf32>
    %272 = arith.mulf %271, %269 : vector<8x128xf32>
    %273 = arith.mulf %266, %219 : vector<8x128xf32>
    %274 = arith.addf %272, %273 : vector<8x128xf32>
    %275 = vector.shape_cast %252 : vector<8x1xi1> to vector<8x1xi1>
    %276 = vector.broadcast %275 : vector<8x1xi1> to vector<8x128xi1>
    %277 = arith.select %276, %274, %219 : vector<8x128xi1>, vector<8x128xf32>
    %c3_i32_102 = arith.constant 3 : i32
    %278 = vector.broadcast %c3_i32_102 : i32 to vector<8x1xi32>
    %279 = arith.cmpi sgt, %12, %278 : vector<8x1xi32>
    %280 = arith.truncf %246 : vector<8x128xf32> to vector<8x128xbf16>
    %c0_103 = arith.constant 0 : index
    %c0_104 = arith.constant 0 : index
    %281 = vector.load %arg6[%c0_103, %c0_104] : memref<128x128xbf16, #tpu.memory_space<vmem>>, vector<128x128xbf16>
    %cst_105 = arith.constant dense<0.000000e+00> : vector<8x128xf32>
    %282 = tpu.matmul %280, %281, %cst_105 {dimension_numbers = #tpu.dot_dimension_numbers<[1], [0], [0], [1], [0, 0, 1, 1], [], []>} : vector<8x128xbf16>, vector<128x128xbf16>, vector<8x128xf32> -> vector<8x128xf32>
    %c0_106 = arith.constant 0 : index
    %c0_107 = arith.constant 0 : index
    %283 = vector.load %arg7[%c0_106, %c0_107] : memref<1x128xf32, #tpu.memory_space<vmem>>, vector<1x128xf32>
    %284 = vector.broadcast %283 : vector<1x128xf32> to vector<8x128xf32>
    %285 = arith.addf %282, %284 : vector<8x128xf32>
    %286 = arith.addf %250, %285 : vector<8x128xf32>
    %287 = arith.negf %286 : vector<8x128xf32>
    %288 = math.exp %287 : vector<8x128xf32>
    %cst_108 = arith.constant 1.000000e+00 : f32
    %289 = vector.broadcast %cst_108 : f32 to vector<8x128xf32>
    %290 = arith.addf %289, %288 : vector<8x128xf32>
    %291 = arith.divf %289, %290 : vector<8x128xf32>
    %c64_i32_109 = arith.constant 64 : i32
    %292 = tpu.dynamic_rotate %291 by %c64_i32_109 dim 1 : vector<8x128xf32>, i32 -> vector<8x128xf32>
    %c96_i32_110 = arith.constant 96 : i32
    %293 = tpu.dynamic_rotate %291 by %c96_i32_110 dim 1 : vector<8x128xf32>, i32 -> vector<8x128xf32>
    %294 = arith.mulf %292, %285 : vector<8x128xf32>
    %295 = arith.addf %250, %294 : vector<8x128xf32>
    %296 = math.tanh %295 : vector<8x128xf32>
    %cst_111 = arith.constant 1.000000e+00 : f32
    %297 = vector.broadcast %cst_111 : f32 to vector<8x128xf32>
    %298 = arith.subf %297, %293 : vector<8x128xf32>
    %299 = arith.mulf %298, %296 : vector<8x128xf32>
    %300 = arith.mulf %293, %246 : vector<8x128xf32>
    %301 = arith.addf %299, %300 : vector<8x128xf32>
    %302 = vector.shape_cast %279 : vector<8x1xi1> to vector<8x1xi1>
    %303 = vector.broadcast %302 : vector<8x1xi1> to vector<8x128xi1>
    %304 = arith.select %303, %301, %246 : vector<8x128xi1>, vector<8x128xf32>
    %c40_112 = arith.constant 40 : index
    %c0_113 = arith.constant 0 : index
    %305 = vector.load %arg13[%c40_112, %c0_113] : memref<64x256xbf16, #tpu.memory_space<vmem>>, vector<8x128xbf16>
    %306 = arith.extf %305 : vector<8x128xbf16> to vector<8x128xf32>
    %c16_114 = arith.constant 16 : index
    %c128_115 = arith.constant 128 : index
    %307 = vector.load %arg13[%c16_114, %c128_115] : memref<64x256xbf16, #tpu.memory_space<vmem>>, vector<8x128xbf16>
    %308 = arith.extf %307 : vector<8x128xbf16> to vector<8x128xf32>
    %c5_i32_116 = arith.constant 5 : i32
    %309 = vector.broadcast %c5_i32_116 : i32 to vector<8x1xi32>
    %310 = arith.cmpi sgt, %12, %309 : vector<8x1xi32>
    %311 = arith.truncf %277 : vector<8x128xf32> to vector<8x128xbf16>
    %c0_117 = arith.constant 0 : index
    %c0_118 = arith.constant 0 : index
    %312 = vector.load %arg4[%c0_117, %c0_118] : memref<128x128xbf16, #tpu.memory_space<vmem>>, vector<128x128xbf16>
    %cst_119 = arith.constant dense<0.000000e+00> : vector<8x128xf32>
    %313 = tpu.matmul %311, %312, %cst_119 {dimension_numbers = #tpu.dot_dimension_numbers<[1], [0], [0], [1], [0, 0, 1, 1], [], []>} : vector<8x128xbf16>, vector<128x128xbf16>, vector<8x128xf32> -> vector<8x128xf32>
    %c0_120 = arith.constant 0 : index
    %c0_121 = arith.constant 0 : index
    %314 = vector.load %arg5[%c0_120, %c0_121] : memref<1x128xf32, #tpu.memory_space<vmem>>, vector<1x128xf32>
    %315 = vector.broadcast %314 : vector<1x128xf32> to vector<8x128xf32>
    %316 = arith.addf %313, %315 : vector<8x128xf32>
    %317 = arith.addf %306, %316 : vector<8x128xf32>
    %318 = arith.negf %317 : vector<8x128xf32>
    %319 = math.exp %318 : vector<8x128xf32>
    %cst_122 = arith.constant 1.000000e+00 : f32
    %320 = vector.broadcast %cst_122 : f32 to vector<8x128xf32>
    %321 = arith.addf %320, %319 : vector<8x128xf32>
    %322 = arith.divf %320, %321 : vector<8x128xf32>
    %c64_i32_123 = arith.constant 64 : i32
    %323 = tpu.dynamic_rotate %322 by %c64_i32_123 dim 1 : vector<8x128xf32>, i32 -> vector<8x128xf32>
    %c96_i32_124 = arith.constant 96 : i32
    %324 = tpu.dynamic_rotate %322 by %c96_i32_124 dim 1 : vector<8x128xf32>, i32 -> vector<8x128xf32>
    %325 = arith.mulf %323, %316 : vector<8x128xf32>
    %326 = arith.addf %306, %325 : vector<8x128xf32>
    %327 = math.tanh %326 : vector<8x128xf32>
    %cst_125 = arith.constant 1.000000e+00 : f32
    %328 = vector.broadcast %cst_125 : f32 to vector<8x128xf32>
    %329 = arith.subf %328, %324 : vector<8x128xf32>
    %330 = arith.mulf %329, %327 : vector<8x128xf32>
    %331 = arith.mulf %324, %277 : vector<8x128xf32>
    %332 = arith.addf %330, %331 : vector<8x128xf32>
    %333 = vector.shape_cast %310 : vector<8x1xi1> to vector<8x1xi1>
    %334 = vector.broadcast %333 : vector<8x1xi1> to vector<8x128xi1>
    %335 = arith.select %334, %332, %277 : vector<8x128xi1>, vector<8x128xf32>
    %c2_i32_126 = arith.constant 2 : i32
    %336 = vector.broadcast %c2_i32_126 : i32 to vector<8x1xi32>
    %337 = arith.cmpi sgt, %12, %336 : vector<8x1xi32>
    %338 = arith.truncf %304 : vector<8x128xf32> to vector<8x128xbf16>
    %c0_127 = arith.constant 0 : index
    %c0_128 = arith.constant 0 : index
    %339 = vector.load %arg6[%c0_127, %c0_128] : memref<128x128xbf16, #tpu.memory_space<vmem>>, vector<128x128xbf16>
    %cst_129 = arith.constant dense<0.000000e+00> : vector<8x128xf32>
    %340 = tpu.matmul %338, %339, %cst_129 {dimension_numbers = #tpu.dot_dimension_numbers<[1], [0], [0], [1], [0, 0, 1, 1], [], []>} : vector<8x128xbf16>, vector<128x128xbf16>, vector<8x128xf32> -> vector<8x128xf32>
    %c0_130 = arith.constant 0 : index
    %c0_131 = arith.constant 0 : index
    %341 = vector.load %arg7[%c0_130, %c0_131] : memref<1x128xf32, #tpu.memory_space<vmem>>, vector<1x128xf32>
    %342 = vector.broadcast %341 : vector<1x128xf32> to vector<8x128xf32>
    %343 = arith.addf %340, %342 : vector<8x128xf32>
    %344 = arith.addf %308, %343 : vector<8x128xf32>
    %345 = arith.negf %344 : vector<8x128xf32>
    %346 = math.exp %345 : vector<8x128xf32>
    %cst_132 = arith.constant 1.000000e+00 : f32
    %347 = vector.broadcast %cst_132 : f32 to vector<8x128xf32>
    %348 = arith.addf %347, %346 : vector<8x128xf32>
    %349 = arith.divf %347, %348 : vector<8x128xf32>
    %c64_i32_133 = arith.constant 64 : i32
    %350 = tpu.dynamic_rotate %349 by %c64_i32_133 dim 1 : vector<8x128xf32>, i32 -> vector<8x128xf32>
    %c96_i32_134 = arith.constant 96 : i32
    %351 = tpu.dynamic_rotate %349 by %c96_i32_134 dim 1 : vector<8x128xf32>, i32 -> vector<8x128xf32>
    %352 = arith.mulf %350, %343 : vector<8x128xf32>
    %353 = arith.addf %308, %352 : vector<8x128xf32>
    %354 = math.tanh %353 : vector<8x128xf32>
    %cst_135 = arith.constant 1.000000e+00 : f32
    %355 = vector.broadcast %cst_135 : f32 to vector<8x128xf32>
    %356 = arith.subf %355, %351 : vector<8x128xf32>
    %357 = arith.mulf %356, %354 : vector<8x128xf32>
    %358 = arith.mulf %351, %304 : vector<8x128xf32>
    %359 = arith.addf %357, %358 : vector<8x128xf32>
    %360 = vector.shape_cast %337 : vector<8x1xi1> to vector<8x1xi1>
    %361 = vector.broadcast %360 : vector<8x1xi1> to vector<8x128xi1>
    %362 = arith.select %361, %359, %304 : vector<8x128xi1>, vector<8x128xf32>
    %c48_136 = arith.constant 48 : index
    %c0_137 = arith.constant 0 : index
    %363 = vector.load %arg13[%c48_136, %c0_137] : memref<64x256xbf16, #tpu.memory_space<vmem>>, vector<8x128xbf16>
    %364 = arith.extf %363 : vector<8x128xbf16> to vector<8x128xf32>
    %c8_138 = arith.constant 8 : index
    %c128_139 = arith.constant 128 : index
    %365 = vector.load %arg13[%c8_138, %c128_139] : memref<64x256xbf16, #tpu.memory_space<vmem>>, vector<8x128xbf16>
    %366 = arith.extf %365 : vector<8x128xbf16> to vector<8x128xf32>
    %c6_i32_140 = arith.constant 6 : i32
    %367 = vector.broadcast %c6_i32_140 : i32 to vector<8x1xi32>
    %368 = arith.cmpi sgt, %12, %367 : vector<8x1xi32>
    %369 = arith.truncf %335 : vector<8x128xf32> to vector<8x128xbf16>
    %c0_141 = arith.constant 0 : index
    %c0_142 = arith.constant 0 : index
    %370 = vector.load %arg4[%c0_141, %c0_142] : memref<128x128xbf16, #tpu.memory_space<vmem>>, vector<128x128xbf16>
    %cst_143 = arith.constant dense<0.000000e+00> : vector<8x128xf32>
    %371 = tpu.matmul %369, %370, %cst_143 {dimension_numbers = #tpu.dot_dimension_numbers<[1], [0], [0], [1], [0, 0, 1, 1], [], []>} : vector<8x128xbf16>, vector<128x128xbf16>, vector<8x128xf32> -> vector<8x128xf32>
    %c0_144 = arith.constant 0 : index
    %c0_145 = arith.constant 0 : index
    %372 = vector.load %arg5[%c0_144, %c0_145] : memref<1x128xf32, #tpu.memory_space<vmem>>, vector<1x128xf32>
    %373 = vector.broadcast %372 : vector<1x128xf32> to vector<8x128xf32>
    %374 = arith.addf %371, %373 : vector<8x128xf32>
    %375 = arith.addf %364, %374 : vector<8x128xf32>
    %376 = arith.negf %375 : vector<8x128xf32>
    %377 = math.exp %376 : vector<8x128xf32>
    %cst_146 = arith.constant 1.000000e+00 : f32
    %378 = vector.broadcast %cst_146 : f32 to vector<8x128xf32>
    %379 = arith.addf %378, %377 : vector<8x128xf32>
    %380 = arith.divf %378, %379 : vector<8x128xf32>
    %c64_i32_147 = arith.constant 64 : i32
    %381 = tpu.dynamic_rotate %380 by %c64_i32_147 dim 1 : vector<8x128xf32>, i32 -> vector<8x128xf32>
    %c96_i32_148 = arith.constant 96 : i32
    %382 = tpu.dynamic_rotate %380 by %c96_i32_148 dim 1 : vector<8x128xf32>, i32 -> vector<8x128xf32>
    %383 = arith.mulf %381, %374 : vector<8x128xf32>
    %384 = arith.addf %364, %383 : vector<8x128xf32>
    %385 = math.tanh %384 : vector<8x128xf32>
    %cst_149 = arith.constant 1.000000e+00 : f32
    %386 = vector.broadcast %cst_149 : f32 to vector<8x128xf32>
    %387 = arith.subf %386, %382 : vector<8x128xf32>
    %388 = arith.mulf %387, %385 : vector<8x128xf32>
    %389 = arith.mulf %382, %335 : vector<8x128xf32>
    %390 = arith.addf %388, %389 : vector<8x128xf32>
    %391 = vector.shape_cast %368 : vector<8x1xi1> to vector<8x1xi1>
    %392 = vector.broadcast %391 : vector<8x1xi1> to vector<8x128xi1>
    %393 = arith.select %392, %390, %335 : vector<8x128xi1>, vector<8x128xf32>
    %c1_i32_150 = arith.constant 1 : i32
    %394 = vector.broadcast %c1_i32_150 : i32 to vector<8x1xi32>
    %395 = arith.cmpi sgt, %12, %394 : vector<8x1xi32>
    %396 = arith.truncf %362 : vector<8x128xf32> to vector<8x128xbf16>
    %c0_151 = arith.constant 0 : index
    %c0_152 = arith.constant 0 : index
    %397 = vector.load %arg6[%c0_151, %c0_152] : memref<128x128xbf16, #tpu.memory_space<vmem>>, vector<128x128xbf16>
    %cst_153 = arith.constant dense<0.000000e+00> : vector<8x128xf32>
    %398 = tpu.matmul %396, %397, %cst_153 {dimension_numbers = #tpu.dot_dimension_numbers<[1], [0], [0], [1], [0, 0, 1, 1], [], []>} : vector<8x128xbf16>, vector<128x128xbf16>, vector<8x128xf32> -> vector<8x128xf32>
    %c0_154 = arith.constant 0 : index
    %c0_155 = arith.constant 0 : index
    %399 = vector.load %arg7[%c0_154, %c0_155] : memref<1x128xf32, #tpu.memory_space<vmem>>, vector<1x128xf32>
    %400 = vector.broadcast %399 : vector<1x128xf32> to vector<8x128xf32>
    %401 = arith.addf %398, %400 : vector<8x128xf32>
    %402 = arith.addf %366, %401 : vector<8x128xf32>
    %403 = arith.negf %402 : vector<8x128xf32>
    %404 = math.exp %403 : vector<8x128xf32>
    %cst_156 = arith.constant 1.000000e+00 : f32
    %405 = vector.broadcast %cst_156 : f32 to vector<8x128xf32>
    %406 = arith.addf %405, %404 : vector<8x128xf32>
    %407 = arith.divf %405, %406 : vector<8x128xf32>
    %c64_i32_157 = arith.constant 64 : i32
    %408 = tpu.dynamic_rotate %407 by %c64_i32_157 dim 1 : vector<8x128xf32>, i32 -> vector<8x128xf32>
    %c96_i32_158 = arith.constant 96 : i32
    %409 = tpu.dynamic_rotate %407 by %c96_i32_158 dim 1 : vector<8x128xf32>, i32 -> vector<8x128xf32>
    %410 = arith.mulf %408, %401 : vector<8x128xf32>
    %411 = arith.addf %366, %410 : vector<8x128xf32>
    %412 = math.tanh %411 : vector<8x128xf32>
    %cst_159 = arith.constant 1.000000e+00 : f32
    %413 = vector.broadcast %cst_159 : f32 to vector<8x128xf32>
    %414 = arith.subf %413, %409 : vector<8x128xf32>
    %415 = arith.mulf %414, %412 : vector<8x128xf32>
    %416 = arith.mulf %409, %362 : vector<8x128xf32>
    %417 = arith.addf %415, %416 : vector<8x128xf32>
    %418 = vector.shape_cast %395 : vector<8x1xi1> to vector<8x1xi1>
    %419 = vector.broadcast %418 : vector<8x1xi1> to vector<8x128xi1>
    %420 = arith.select %419, %417, %362 : vector<8x128xi1>, vector<8x128xf32>
    %c56_160 = arith.constant 56 : index
    %c0_161 = arith.constant 0 : index
    %421 = vector.load %arg13[%c56_160, %c0_161] : memref<64x256xbf16, #tpu.memory_space<vmem>>, vector<8x128xbf16>
    %422 = arith.extf %421 : vector<8x128xbf16> to vector<8x128xf32>
    %c0_162 = arith.constant 0 : index
    %c128_163 = arith.constant 128 : index
    %423 = vector.load %arg13[%c0_162, %c128_163] : memref<64x256xbf16, #tpu.memory_space<vmem>>, vector<8x128xbf16>
    %424 = arith.extf %423 : vector<8x128xbf16> to vector<8x128xf32>
    %c7_i32_164 = arith.constant 7 : i32
    %425 = vector.broadcast %c7_i32_164 : i32 to vector<8x1xi32>
    %426 = arith.cmpi sgt, %12, %425 : vector<8x1xi32>
    %427 = arith.truncf %393 : vector<8x128xf32> to vector<8x128xbf16>
    %c0_165 = arith.constant 0 : index
    %c0_166 = arith.constant 0 : index
    %428 = vector.load %arg4[%c0_165, %c0_166] : memref<128x128xbf16, #tpu.memory_space<vmem>>, vector<128x128xbf16>
    %cst_167 = arith.constant dense<0.000000e+00> : vector<8x128xf32>
    %429 = tpu.matmul %427, %428, %cst_167 {dimension_numbers = #tpu.dot_dimension_numbers<[1], [0], [0], [1], [0, 0, 1, 1], [], []>} : vector<8x128xbf16>, vector<128x128xbf16>, vector<8x128xf32> -> vector<8x128xf32>
    %c0_168 = arith.constant 0 : index
    %c0_169 = arith.constant 0 : index
    %430 = vector.load %arg5[%c0_168, %c0_169] : memref<1x128xf32, #tpu.memory_space<vmem>>, vector<1x128xf32>
    %431 = vector.broadcast %430 : vector<1x128xf32> to vector<8x128xf32>
    %432 = arith.addf %429, %431 : vector<8x128xf32>
    %433 = arith.addf %422, %432 : vector<8x128xf32>
    %434 = arith.negf %433 : vector<8x128xf32>
    %435 = math.exp %434 : vector<8x128xf32>
    %cst_170 = arith.constant 1.000000e+00 : f32
    %436 = vector.broadcast %cst_170 : f32 to vector<8x128xf32>
    %437 = arith.addf %436, %435 : vector<8x128xf32>
    %438 = arith.divf %436, %437 : vector<8x128xf32>
    %c64_i32_171 = arith.constant 64 : i32
    %439 = tpu.dynamic_rotate %438 by %c64_i32_171 dim 1 : vector<8x128xf32>, i32 -> vector<8x128xf32>
    %c96_i32_172 = arith.constant 96 : i32
    %440 = tpu.dynamic_rotate %438 by %c96_i32_172 dim 1 : vector<8x128xf32>, i32 -> vector<8x128xf32>
    %441 = arith.mulf %439, %432 : vector<8x128xf32>
    %442 = arith.addf %422, %441 : vector<8x128xf32>
    %443 = math.tanh %442 : vector<8x128xf32>
    %cst_173 = arith.constant 1.000000e+00 : f32
    %444 = vector.broadcast %cst_173 : f32 to vector<8x128xf32>
    %445 = arith.subf %444, %440 : vector<8x128xf32>
    %446 = arith.mulf %445, %443 : vector<8x128xf32>
    %447 = arith.mulf %440, %393 : vector<8x128xf32>
    %448 = arith.addf %446, %447 : vector<8x128xf32>
    %449 = vector.shape_cast %426 : vector<8x1xi1> to vector<8x1xi1>
    %450 = vector.broadcast %449 : vector<8x1xi1> to vector<8x128xi1>
    %451 = arith.select %450, %448, %393 : vector<8x128xi1>, vector<8x128xf32>
    %c0_i32_174 = arith.constant 0 : i32
    %452 = vector.broadcast %c0_i32_174 : i32 to vector<8x1xi32>
    %453 = arith.cmpi sgt, %12, %452 : vector<8x1xi32>
    %454 = arith.truncf %420 : vector<8x128xf32> to vector<8x128xbf16>
    %c0_175 = arith.constant 0 : index
    %c0_176 = arith.constant 0 : index
    %455 = vector.load %arg6[%c0_175, %c0_176] : memref<128x128xbf16, #tpu.memory_space<vmem>>, vector<128x128xbf16>
    %cst_177 = arith.constant dense<0.000000e+00> : vector<8x128xf32>
    %456 = tpu.matmul %454, %455, %cst_177 {dimension_numbers = #tpu.dot_dimension_numbers<[1], [0], [0], [1], [0, 0, 1, 1], [], []>} : vector<8x128xbf16>, vector<128x128xbf16>, vector<8x128xf32> -> vector<8x128xf32>
    %c0_178 = arith.constant 0 : index
    %c0_179 = arith.constant 0 : index
    %457 = vector.load %arg7[%c0_178, %c0_179] : memref<1x128xf32, #tpu.memory_space<vmem>>, vector<1x128xf32>
    %458 = vector.broadcast %457 : vector<1x128xf32> to vector<8x128xf32>
    %459 = arith.addf %456, %458 : vector<8x128xf32>
    %460 = arith.addf %424, %459 : vector<8x128xf32>
    %461 = arith.negf %460 : vector<8x128xf32>
    %462 = math.exp %461 : vector<8x128xf32>
    %cst_180 = arith.constant 1.000000e+00 : f32
    %463 = vector.broadcast %cst_180 : f32 to vector<8x128xf32>
    %464 = arith.addf %463, %462 : vector<8x128xf32>
    %465 = arith.divf %463, %464 : vector<8x128xf32>
    %c64_i32_181 = arith.constant 64 : i32
    %466 = tpu.dynamic_rotate %465 by %c64_i32_181 dim 1 : vector<8x128xf32>, i32 -> vector<8x128xf32>
    %c96_i32_182 = arith.constant 96 : i32
    %467 = tpu.dynamic_rotate %465 by %c96_i32_182 dim 1 : vector<8x128xf32>, i32 -> vector<8x128xf32>
    %468 = arith.mulf %466, %459 : vector<8x128xf32>
    %469 = arith.addf %424, %468 : vector<8x128xf32>
    %470 = math.tanh %469 : vector<8x128xf32>
    %cst_183 = arith.constant 1.000000e+00 : f32
    %471 = vector.broadcast %cst_183 : f32 to vector<8x128xf32>
    %472 = arith.subf %471, %467 : vector<8x128xf32>
    %473 = arith.mulf %472, %470 : vector<8x128xf32>
    %474 = arith.mulf %467, %420 : vector<8x128xf32>
    %475 = arith.addf %473, %474 : vector<8x128xf32>
    %476 = vector.shape_cast %453 : vector<8x1xi1> to vector<8x1xi1>
    %477 = vector.broadcast %476 : vector<8x1xi1> to vector<8x128xi1>
    %478 = arith.select %477, %475, %420 : vector<8x128xi1>, vector<8x128xf32>
    %479 = tpu.concatenate %451, %478 in 1 : vector<8x128xf32>, vector<8x128xf32> -> vector<8x256xf32>
    %480 = arith.truncf %479 : vector<8x256xf32> to vector<8x256xbf16>
    %c0_184 = arith.constant 0 : index
    %c0_185 = arith.constant 0 : index
    %481 = vector.load %arg8[%c0_184, %c0_185] : memref<256x128xbf16, #tpu.memory_space<vmem>>, vector<256x128xbf16>
    %cst_186 = arith.constant dense<0.000000e+00> : vector<8x128xf32>
    %482 = tpu.matmul %480, %481, %cst_186 {dimension_numbers = #tpu.dot_dimension_numbers<[1], [0], [0], [1], [0, 0, 1, 1], [], []>} : vector<8x256xbf16>, vector<256x128xbf16>, vector<8x128xf32> -> vector<8x128xf32>
    %c0_187 = arith.constant 0 : index
    %c0_188 = arith.constant 0 : index
    %483 = vector.load %arg9[%c0_187, %c0_188] : memref<1x128xf32, #tpu.memory_space<vmem>>, vector<1x128xf32>
    %484 = vector.broadcast %483 : vector<1x128xf32> to vector<8x128xf32>
    %485 = arith.addf %482, %484 : vector<8x128xf32>
    %cst_189 = arith.constant 0.000000e+00 : f32
    %486 = vector.broadcast %cst_189 : f32 to vector<8x128xf32>
    %487 = arith.cmpf ogt, %485, %486 : vector<8x128xf32>
    %cst_190 = arith.constant 0.00999999977 : f32
    %488 = vector.broadcast %cst_190 : f32 to vector<8x128xf32>
    %489 = arith.mulf %488, %485 : vector<8x128xf32>
    %490 = arith.select %487, %485, %489 : vector<8x128xi1>, vector<8x128xf32>
    %491 = arith.truncf %490 : vector<8x128xf32> to vector<8x128xbf16>
    %c0_191 = arith.constant 0 : index
    %c0_192 = arith.constant 0 : index
    %492 = vector.load %arg10[%c0_191, %c0_192] : memref<128x128xbf16, #tpu.memory_space<vmem>>, vector<128x128xbf16>
    %cst_193 = arith.constant dense<0.000000e+00> : vector<8x128xf32>
    %493 = tpu.matmul %491, %492, %cst_193 {dimension_numbers = #tpu.dot_dimension_numbers<[1], [0], [0], [1], [0, 0, 1, 1], [], []>} : vector<8x128xbf16>, vector<128x128xbf16>, vector<8x128xf32> -> vector<8x128xf32>
    %c0_194 = arith.constant 0 : index
    %c0_195 = arith.constant 0 : index
    %494 = vector.load %arg11[%c0_194, %c0_195] : memref<1x128xf32, #tpu.memory_space<vmem>>, vector<1x128xf32>
    %495 = vector.broadcast %494 : vector<1x128xf32> to vector<8x128xf32>
    %496 = arith.addf %493, %495 : vector<8x128xf32>
    %c0_196 = arith.constant 0 : index
    %c0_197 = arith.constant 0 : index
    %497 = vector.load %arg12[%c0_196, %c0_197] : memref<8x128xf32, #tpu.memory_space<vmem>>, vector<8x128xf32>
    tpu.vector_store %arg12[%c0_196, %c0_197], %496 {strides = array<i32>} : memref<8x128xf32, #tpu.memory_space<vmem>>, vector<8x128xf32>,
    return
  }
  func.func @transform_0(%arg0: i32) -> (i32, i32, i32) {
    %c0_i32 = arith.constant 0 : i32
    %c0_i32_0 = arith.constant 0 : i32
    %c0_i32_1 = arith.constant 0 : i32
    return %c0_i32, %arg0, %c0_i32_0 : i32, i32, i32
  }
  func.func @transform_1(%arg0: i32) -> (i32, i32) {
    %c0_i32 = arith.constant 0 : i32
    %c0_i32_0 = arith.constant 0 : i32
    return %arg0, %c0_i32 : i32, i32
  }
  func.func @transform_2(%arg0: i32) -> (i32, i32) {
    %c0_i32 = arith.constant 0 : i32
    %c0_i32_0 = arith.constant 0 : i32
    %c0_i32_1 = arith.constant 0 : i32
    return %c0_i32, %c0_i32_0 : i32, i32
  }
  func.func @transform_3(%arg0: i32) -> (i32, i32) {
    %c0_i32 = arith.constant 0 : i32
    %c0_i32_0 = arith.constant 0 : i32
    %c0_i32_1 = arith.constant 0 : i32
    return %c0_i32, %c0_i32_0 : i32, i32
  }
  func.func @transform_4(%arg0: i32) -> (i32, i32) {
    %c0_i32 = arith.constant 0 : i32
    %c0_i32_0 = arith.constant 0 : i32
    %c0_i32_1 = arith.constant 0 : i32
    return %c0_i32, %c0_i32_0 : i32, i32
  }
  func.func @transform_5(%arg0: i32) -> (i32, i32) {
    %c0_i32 = arith.constant 0 : i32
    %c0_i32_0 = arith.constant 0 : i32
    %c0_i32_1 = arith.constant 0 : i32
    return %c0_i32, %c0_i32_0 : i32, i32
  }
  func.func @transform_6(%arg0: i32) -> (i32, i32) {
    %c0_i32 = arith.constant 0 : i32
    %c0_i32_0 = arith.constant 0 : i32
    %c0_i32_1 = arith.constant 0 : i32
    return %c0_i32, %c0_i32_0 : i32, i32
  }
  func.func @transform_7(%arg0: i32) -> (i32, i32) {
    %c0_i32 = arith.constant 0 : i32
    %c0_i32_0 = arith.constant 0 : i32
    %c0_i32_1 = arith.constant 0 : i32
    return %c0_i32, %c0_i32_0 : i32, i32
  }
  func.func @transform_8(%arg0: i32) -> (i32, i32) {
    %c0_i32 = arith.constant 0 : i32
    %c0_i32_0 = arith.constant 0 : i32
    %c0_i32_1 = arith.constant 0 : i32
    return %c0_i32, %c0_i32_0 : i32, i32
  }
  func.func @transform_9(%arg0: i32) -> (i32, i32) {
    %c0_i32 = arith.constant 0 : i32
    %c0_i32_0 = arith.constant 0 : i32
    %c0_i32_1 = arith.constant 0 : i32
    return %c0_i32, %c0_i32_0 : i32, i32
  }
  func.func @transform_10(%arg0: i32) -> (i32, i32) {
    %c0_i32 = arith.constant 0 : i32
    %c0_i32_0 = arith.constant 0 : i32
    %c0_i32_1 = arith.constant 0 : i32
    return %c0_i32, %c0_i32_0 : i32, i32
  }
  func.func @transform_11(%arg0: i32) -> (i32, i32) {
    %c0_i32 = arith.constant 0 : i32
    %c0_i32_0 = arith.constant 0 : i32
    return %arg0, %c0_i32 : i32, i32
  }
}

</mosaic_0001>

<llo_original>
// kernel: vocab_corrector_forward.1
$region0: #{vocab_corrector_forward.1}
  #allocation0 [shape = 'u32[]', space=smem, size = 0x4, offset = 0x4, fixed_abs, tag = 'smem constant byte address 0x4 - core index']
  #allocation1 [shape = 'u32[144,128]{1,0:T(1,128)}', space=vmem, size = 0x12000, scoped, tag = 'internal scratch']
  #allocation2 [shape = 'bf16[64,256]{1,0:T(16,128)(2,1)}', space=vmem, size = 0x8000, scoped, tag = 'scratch operand']
  %s0 = inlined_call_operand.vmem [shape: s32[8,8,1], index: 0, kind: input, shape index: {}]
  %s1 = inlined_call_operand.vmem [shape: s32[8,1], index: 1, kind: input, shape index: {}]
  %s2 = inlined_call_operand.vmem [shape: bf16[128,256], index: 2, kind: input, shape index: {}]
  %s3 = inlined_call_operand.hbm [shape: bf16[128,128], index: 3, kind: input, shape index: {}]
  %s4 = inlined_call_operand.vmem [shape: f32[1,128], index: 4, kind: input, shape index: {}]
  %s5 = inlined_call_operand.hbm [shape: bf16[128,128], index: 5, kind: input, shape index: {}]
  %s6 = inlined_call_operand.vmem [shape: f32[1,128], index: 6, kind: input, shape index: {}]
  %s7 = inlined_call_operand.hbm [shape: bf16[256,128], index: 7, kind: input, shape index: {}]
  %s8 = inlined_call_operand.vmem [shape: f32[1,128], index: 8, kind: input, shape index: {}]
  %s9 = inlined_call_operand.hbm [shape: bf16[128,128], index: 9, kind: input, shape index: {}]
  %s10 = inlined_call_operand.vmem [shape: f32[1,128], index: 10, kind: input, shape index: {}]
  %s11 = inlined_call_operand.vmem [shape: f32[8,128], index: 11, kind: output, shape index: {}]
  %s12 = sld [smem:[#allocation0]]
  $region70: #{vocab_corrector_forward.1} parent=0
    _
  %s14 = ssub.s32 1, %s12
  %s15 = scalar_select 0, %s14, %s12
  $region1: #{vocab_corrector_forward.1} parent=0
    #allocation3 [shape = 'u8[32768]{0}', space=vmem, size = 0x8000, scoped, tag = 'input window, operand 3, single buffered']
    #allocation4 [shape = 's32[1]{0}', space=sflag, size = 0x4, scoped, tag = 'scoped memory for vocab_corrector_forward.1']
    #allocation5 [shape = 'u8[32768]{0}', space=vmem, size = 0x8000, scoped, tag = 'input window, operand 5, single buffered']
    #allocation6 [shape = 's32[1]{0}', space=sflag, size = 0x4, scoped, tag = 'scoped memory for vocab_corrector_forward.1']
    #allocation7 [shape = 'u8[65536]{0}', space=vmem, size = 0x10000, scoped, tag = 'input window, operand 7, single buffered']
    #allocation8 [shape = 'u8[32768]{0}', space=vmem, size = 0x8000, scoped, tag = 'input window, operand 9, single buffered']
    #allocation9 [shape = 's32[1]{0}', space=sflag, size = 0x4, scoped, tag = 'scoped memory for vocab_corrector_forward.1']
    %16 = vsyncpa [#allocation4], 0
    %17 = vsyncpa [#allocation6], 0
    %18 = vsyncpa [#allocation9], 0
    // Predicated region
    $region2: #{vocab_corrector_forward.1} parent=1 // pred_check
      _
    $region3: #{vocab_corrector_forward.1} parent=1 // pred_check_branch
      %20 = sbr.rel (0) target = $region5
    $region4: #{vocab_corrector_forward.1} parent=1 // pred_region
      _
    $region5: #{vocab_corrector_forward.1} parent=1 // pred_fallthru
      _
    // Predicated region
    $region6: #{vocab_corrector_forward.1} parent=1 // pred_check
      _
    $region7: #{vocab_corrector_forward.1} parent=1 // pred_check_branch
      %22 = sbr.rel (0) target = $region9
    $region8: #{vocab_corrector_forward.1} parent=1 // pred_region
      _
    $region9: #{vocab_corrector_forward.1} parent=1 // pred_fallthru
      _
    // Predicated region
    $region10: #{vocab_corrector_forward.1} parent=1 // pred_check
      _
    $region11: #{vocab_corrector_forward.1} parent=1 // pred_check_branch
      %24 = sbr.rel (0) target = $region13
    $region12: #{vocab_corrector_forward.1} parent=1 // pred_region
      _
    $region13: #{vocab_corrector_forward.1} parent=1 // pred_fallthru
      _
    // Predicated region
    $region14: #{vocab_corrector_forward.1} parent=1 // pred_check
      _
    $region15: #{vocab_corrector_forward.1} parent=1 // pred_check_branch
      %26 = sbr.rel (0) target = $region17
    $region16: #{vocab_corrector_forward.1} parent=1 // pred_region
      %s28 = ssub.s32 1024, 1024
      %29 = vsyncadd [#allocation4], %s28
      %s30 = sshll.u32 [#allocation3], 4
      %s31 = int_to_ptr.vmem [resolvable:$true] %s30
      %36 = dma.hbm_to_vmem [thread:$0]  %s3, 1024, %s31, [#allocation4], 64, 64, 4
    $region17: #{vocab_corrector_forward.1} parent=1 // pred_fallthru
      _
    // Predicated region
    $region18: #{vocab_corrector_forward.1} parent=1 // pred_check
      _
    $region19: #{vocab_corrector_forward.1} parent=1 // pred_check_branch
      %38 = sbr.rel (0) target = $region21
    $region20: #{vocab_corrector_forward.1} parent=1 // pred_region
      _
    $region21: #{vocab_corrector_forward.1} parent=1 // pred_fallthru
      _
    // Predicated region
    $region22: #{vocab_corrector_forward.1} parent=1 // pred_check
      _
    $region23: #{vocab_corrector_forward.1} parent=1 // pred_check_branch
      %40 = sbr.rel (0) target = $region25
    $region24: #{vocab_corrector_forward.1} parent=1 // pred_region
      %s42 = ssub.s32 1024, 1024
      %43 = vsyncadd [#allocation6], %s42
      %s44 = sshll.u32 [#allocation5], 4
      %s45 = int_to_ptr.vmem [resolvable:$true] %s44
      %50 = dma.hbm_to_vmem [thread:$0]  %s5, 1024, %s45, [#allocation6], 64, 64, 4
    $region25: #{vocab_corrector_forward.1} parent=1 // pred_fallthru
      _
    // Predicated region
    $region26: #{vocab_corrector_forward.1} parent=1 // pred_check
      _
    $region27: #{vocab_corrector_forward.1} parent=1 // pred_check_branch
      %52 = sbr.rel (0) target = $region29
    $region28: #{vocab_corrector_forward.1} parent=1 // pred_region
      _
    $region29: #{vocab_corrector_forward.1} parent=1 // pred_fallthru
      _
    // Predicated region
    $region30: #{vocab_corrector_forward.1} parent=1 // pred_check
      _
    $region31: #{vocab_corrector_forward.1} parent=1 // pred_check_branch
      %54 = sbr.rel (0) target = $region33
    $region32: #{vocab_corrector_forward.1} parent=1 // pred_region
      %s56 = ssub.s32 2048, 2048
      %57 = vsyncadd [#allocation6], %s56
      %s58 = sshll.u32 [#allocation7], 4
      %s59 = int_to_ptr.vmem [resolvable:$true] %s58
      %64 = dma.hbm_to_vmem [thread:$0]  %s7, 2048, %s59, [#allocation6], 64, 64, 4
    $region33: #{vocab_corrector_forward.1} parent=1 // pred_fallthru
      _
    // Predicated region
    $region34: #{vocab_corrector_forward.1} parent=1 // pred_check
      _
    $region35: #{vocab_corrector_forward.1} parent=1 // pred_check_branch
      %66 = sbr.rel (0) target = $region37
    $region36: #{vocab_corrector_forward.1} parent=1 // pred_region
      _
    $region37: #{vocab_corrector_forward.1} parent=1 // pred_fallthru
      _
    // Predicated region
    $region38: #{vocab_corrector_forward.1} parent=1 // pred_check
      _
    $region39: #{vocab_corrector_forward.1} parent=1 // pred_check_branch
      %68 = sbr.rel (0) target = $region41
    $region40: #{vocab_corrector_forward.1} parent=1 // pred_region
      %s70 = ssub.s32 1024, 1024
      %71 = vsyncadd [#allocation9], %s70
      %s72 = sshll.u32 [#allocation8], 4
      %s73 = int_to_ptr.vmem [resolvable:$true] %s72
      %78 = dma.hbm_to_vmem [thread:$0]  %s9, 1024, %s73, [#allocation9], 64, 64, 4
    $region41: #{vocab_corrector_forward.1} parent=1 // pred_fallthru
      _
    // Predicated region
    $region42: #{vocab_corrector_forward.1} parent=1 // pred_check
      _
    $region43: #{vocab_corrector_forward.1} parent=1 // pred_check_branch
      %80 = sbr.rel (0) target = $region45
    $region44: #{vocab_corrector_forward.1} parent=1 // pred_region
      _
    $region45: #{vocab_corrector_forward.1} parent=1 // pred_fallthru
      _
    // Predicated region
    $region46: #{vocab_corrector_forward.1} parent=1 // pred_check
      _
    $region47: #{vocab_corrector_forward.1} parent=1 // pred_check_branch
      %82 = sbr.rel (0) target = $region49
    $region48: #{vocab_corrector_forward.1} parent=1 // pred_region
      %83 = dma.done [#allocation4], 1024
    $region49: #{vocab_corrector_forward.1} parent=1 // pred_fallthru
      _
    // Predicated region
    $region50: #{vocab_corrector_forward.1} parent=1 // pred_check
      _
    $region51: #{vocab_corrector_forward.1} parent=1 // pred_check_branch
      %85 = sbr.rel (0) target = $region53
    $region52: #{vocab_corrector_forward.1} parent=1 // pred_region
      %86 = dma.done [#allocation6], 1024
    $region53: #{vocab_corrector_forward.1} parent=1 // pred_fallthru
      _
    // Predicated region
    $region54: #{vocab_corrector_forward.1} parent=1 // pred_check
      _
    $region55: #{vocab_corrector_forward.1} parent=1 // pred_check_branch
      %88 = sbr.rel (0) target = $region57
    $region56: #{vocab_corrector_forward.1} parent=1 // pred_region
      %89 = dma.done [#allocation6], 2048
    $region57: #{vocab_corrector_forward.1} parent=1 // pred_fallthru
      _
    // Predicated region
    $region58: #{vocab_corrector_forward.1} parent=1 // pred_check
      _
    $region59: #{vocab_corrector_forward.1} parent=1 // pred_check_branch
      %91 = sbr.rel (0) target = $region61
    $region60: #{vocab_corrector_forward.1} parent=1 // pred_region
      %92 = dma.done [#allocation9], 1024
    $region61: #{vocab_corrector_forward.1} parent=1 // pred_fallthru
      _
    %v94 = vld [vmem:[%s0] sm:$0xff]
    %v95 = vld [vmem:[%s0 + $0x8] sm:$0xff]
    %v96 = vld [vmem:[%s0 + $0x10] sm:$0xff]
    %v97 = vld [vmem:[%s0 + $0x18] sm:$0xff]
    %v98 = vld [vmem:[%s0 + $0x20] sm:$0xff]
    %v99 = vld [vmem:[%s0 + $0x28] sm:$0xff]
    %v100 = vld [vmem:[%s0 + $0x30] sm:$0xff]
    %v101 = vld [vmem:[%s0 + $0x38] sm:$0xff]
    %v102 = vlaneseq
    %v103 = vand.u32 %v102, 127
    %104 = vset.pattern.permute.xlu0 0
    %105 = vperm.xlu0 %104, %v94
    %v106 = vpop.permute.xlu0 %105
    %107 = vset.pattern.permute.xlu0 0
    %108 = vperm.xlu0 %107, %v95
    %v109 = vpop.permute.xlu0 %108
    %110 = vset.pattern.permute.xlu0 0
    %111 = vperm.xlu0 %110, %v96
    %v112 = vpop.permute.xlu0 %111
    %113 = vset.pattern.permute.xlu0 0
    %114 = vperm.xlu0 %113, %v97
    %v115 = vpop.permute.xlu0 %114
    %116 = vset.pattern.permute.xlu0 0
    %117 = vperm.xlu0 %116, %v98
    %v118 = vpop.permute.xlu0 %117
    %119 = vset.pattern.permute.xlu0 0
    %120 = vperm.xlu0 %119, %v99
    %v121 = vpop.permute.xlu0 %120
    %122 = vset.pattern.permute.xlu0 0
    %123 = vperm.xlu0 %122, %v100
    %v124 = vpop.permute.xlu0 %123
    %125 = vset.pattern.permute.xlu0 0
    %126 = vperm.xlu0 %125, %v101
    %v127 = vpop.permute.xlu0 %126
    %vm128 = vcmp.eq.s32.totalorder %v103, %v106
    %vm129 = vcmp.eq.s32.totalorder %v103, %v109
    %vm130 = vcmp.eq.s32.totalorder %v103, %v112
    %vm131 = vcmp.eq.s32.totalorder %v103, %v115
    %vm132 = vcmp.eq.s32.totalorder %v103, %v118
    %vm133 = vcmp.eq.s32.totalorder %v103, %v121
    %vm134 = vcmp.eq.s32.totalorder %v103, %v124
    %vm135 = vcmp.eq.s32.totalorder %v103, %v127
    %v136 = vsel %vm128, 1, 0
    %v137 = vsel %vm129, 1, 0
    %v138 = vsel %vm130, 1, 0
    %v139 = vsel %vm131, 1, 0
    %v140 = vsel %vm132, 1, 0
    %v141 = vsel %vm133, 1, 0
    %v142 = vsel %vm134, 1, 0
    %v143 = vsel %vm135, 1, 0
    %v144 = vcvt.s32.f32 %v136
    %v145 = vcvt.s32.f32 %v137
    %v146 = vcvt.s32.f32 %v138
    %v147 = vcvt.s32.f32 %v139
    %v148 = vcvt.s32.f32 %v140
    %v149 = vcvt.s32.f32 %v141
    %v150 = vcvt.s32.f32 %v142
    %v151 = vcvt.s32.f32 %v143
    %v152 = vpack.c.bf16 %v145, %v144
    %v153 = vpack.c.bf16 %v147, %v146
    %v154 = vpack.c.bf16 %v149, %v148
    %v155 = vpack.c.bf16 %v151, %v150
    %v156 = vld [vmem:[%s2] sm:$0xff]
    %v157 = vld [vmem:[%s2 + $0x8] sm:$0xff]
    %v158 = vld [vmem:[%s2 + $0x10] sm:$0xff]
    %v159 = vld [vmem:[%s2 + $0x18] sm:$0xff]
    %v160 = vld [vmem:[%s2 + $0x20] sm:$0xff]
    %v161 = vld [vmem:[%s2 + $0x28] sm:$0xff]
    %v162 = vld [vmem:[%s2 + $0x30] sm:$0xff]
    %v163 = vld [vmem:[%s2 + $0x38] sm:$0xff]
    %v164 = vld [vmem:[%s2 + $0x40] sm:$0xff]
    %v165 = vld [vmem:[%s2 + $0x48] sm:$0xff]
    %v166 = vld [vmem:[%s2 + $0x50] sm:$0xff]
    %v167 = vld [vmem:[%s2 + $0x58] sm:$0xff]
    %v168 = vld [vmem:[%s2 + $0x60] sm:$0xff]
    %v169 = vld [vmem:[%s2 + $0x68] sm:$0xff]
    %v170 = vld [vmem:[%s2 + $0x70] sm:$0xff]
    %v171 = vld [vmem:[%s2 + $0x78] sm:$0xff]
    %v188 = vunpack.c.l.b16 %v156
    %v189 = vunpack.c.h.b16 %v156
    %v190 = vunpack.c.l.b16 %v157
    %v191 = vunpack.c.h.b16 %v157
    %v192 = vunpack.c.l.b16 %v158
    %v193 = vunpack.c.h.b16 %v158
    %v194 = vunpack.c.l.b16 %v159
    %v195 = vunpack.c.h.b16 %v159
    %v196 = vunpack.c.l.b16 %v160
    %v197 = vunpack.c.h.b16 %v160
    %v198 = vunpack.c.l.b16 %v161
    %v199 = vunpack.c.h.b16 %v161
    %v200 = vunpack.c.l.b16 %v162
    %v201 = vunpack.c.h.b16 %v162
    %v202 = vunpack.c.l.b16 %v163
    %v203 = vunpack.c.h.b16 %v163
    %v204 = vunpack.c.l.b16 %v164
    %v205 = vunpack.c.h.b16 %v164
    %v206 = vunpack.c.l.b16 %v165
    %v207 = vunpack.c.h.b16 %v165
    %v208 = vunpack.c.l.b16 %v166
    %v209 = vunpack.c.h.b16 %v166
    %v210 = vunpack.c.l.b16 %v167
    %v211 = vunpack.c.h.b16 %v167
    %v212 = vunpack.c.l.b16 %v168
    %v213 = vunpack.c.h.b16 %v168
    %v214 = vunpack.c.l.b16 %v169
    %v215 = vunpack.c.h.b16 %v169
    %v216 = vunpack.c.l.b16 %v170
    %v217 = vunpack.c.h.b16 %v170
    %v218 = vunpack.c.l.b16 %v171
    %v219 = vunpack.c.h.b16 %v171
    %v220 = vpack.c.b16 %v190, %v188
    %v221 = vpack.c.b16 %v191, %v189
    %v222 = vpack.c.b16 %v194, %v192
    %v223 = vpack.c.b16 %v195, %v193
    %v224 = vpack.c.b16 %v198, %v196
    %v225 = vpack.c.b16 %v199, %v197
    %v226 = vpack.c.b16 %v202, %v200
    %v227 = vpack.c.b16 %v203, %v201
    %v228 = vpack.c.b16 %v206, %v204
    %v229 = vpack.c.b16 %v207, %v205
    %v230 = vpack.c.b16 %v210, %v208
    %v231 = vpack.c.b16 %v211, %v209
    %v232 = vpack.c.b16 %v214, %v212
    %v233 = vpack.c.b16 %v215, %v213
    %v234 = vpack.c.b16 %v218, %v216
    %v235 = vpack.c.b16 %v219, %v217
    %252 = vmatprep.subr.bf16.mxu0 %v221
    %253 = vmatpush1.bf16.msra.mxu0 %v220
    %254 = vmatprep.subr.bf16.mxu0 %v223
    %255 = vmatpush1.bf16.msra.mxu0 %v222
    %256 = vmatprep.subr.bf16.mxu0 %v225
    %257 = vmatpush1.bf16.msra.mxu0 %v224
    %258 = vmatprep.subr.bf16.mxu0 %v227
    %259 = vmatpush1.bf16.msra.mxu0 %v226
    %260 = vmatprep.subr.bf16.mxu0 %v229
    %261 = vmatpush1.bf16.msra.mxu0 %v228
    %262 = vmatprep.subr.bf16.mxu0 %v231
    %263 = vmatpush1.bf16.msra.mxu0 %v230
    %264 = vmatprep.subr.bf16.mxu0 %v233
    %265 = vmatpush1.bf16.msra.mxu0 %v232
    %266 = vmatprep.subr.bf16.mxu0 %v235
    %267 = vmatpush1.bf16.msra.mxu0 %v234
    %268 = vmatprep.subr.bf16.mxu0 0
    %269 = vmatpush1.bf16.msra.mxu0 0
    %270 = vmatprep.subr.bf16.mxu0 0
    %271 = vmatpush1.bf16.msra.mxu0 0
    %272 = vmatprep.subr.bf16.mxu0 0
    %273 = vmatpush1.bf16.msra.mxu0 0
    %274 = vmatprep.subr.bf16.mxu0 0
    %275 = vmatpush1.bf16.msra.mxu0 0
    %276 = vmatprep.subr.bf16.mxu0 0
    %277 = vmatpush1.bf16.msra.mxu0 0
    %278 = vmatprep.subr.bf16.mxu0 0
    %279 = vmatpush1.bf16.msra.mxu0 0
    %280 = vmatprep.subr.bf16.mxu0 0
    %281 = vmatpush1.bf16.msra.mxu0 0
    %282 = vmatprep.subr.bf16.mxu0 0
    %283 = vmatpush1.bf16.msra.mxu0 0
    %284 = vmatprep.mubr.bf16.mxu0 0
    %285 = vmatmul.mubr.bf16.gmra.mrb[0].mxu0 %v152
    %v286 = vpop.f32.mrb[0].mxu0
    %v287 = vadd.f32 0.0, %v286
    %v288 = vpop.f32.mrb[0].mxu0
    %v289 = vadd.f32 0.0, %v288
    %v290 = vpop.f32.mrb[0].mxu0
    %v291 = vadd.f32 0.0, %v290
    %v292 = vpop.f32.mrb[0].mxu0
    %v293 = vadd.f32 0.0, %v292
    %294 = vmatprep.mubr.bf16.mxu0 0
    %295 = vmatmul.mubr.bf16.gmra.mrb[0].mxu0 %v153
    %v296 = vpop.f32.mrb[0].mxu0
    %v297 = vadd.f32 0.0, %v296
    %v298 = vpop.f32.mrb[0].mxu0
    %v299 = vadd.f32 0.0, %v298
    %v300 = vpop.f32.mrb[0].mxu0
    %v301 = vadd.f32 0.0, %v300
    %v302 = vpop.f32.mrb[0].mxu0
    %v303 = vadd.f32 0.0, %v302
    %304 = vmatprep.mubr.bf16.mxu0 0
    %305 = vmatmul.mubr.bf16.gmra.mrb[0].mxu0 %v154
    %v306 = vpop.f32.mrb[0].mxu0
    %v307 = vadd.f32 0.0, %v306
    %v308 = vpop.f32.mrb[0].mxu0
    %v309 = vadd.f32 0.0, %v308
    %v310 = vpop.f32.mrb[0].mxu0
    %v311 = vadd.f32 0.0, %v310
    %v312 = vpop.f32.mrb[0].mxu0
    %v313 = vadd.f32 0.0, %v312
    %314 = vmatprep.mubr.bf16.mxu0 0
    %315 = vmatmul.mubr.bf16.gmra.mrb[0].mxu0 %v155
    %v316 = vpop.f32.mrb[0].mxu0
    %v317 = vadd.f32 0.0, %v316
    %v318 = vpop.f32.mrb[0].mxu0
    %v319 = vadd.f32 0.0, %v318
    %v320 = vpop.f32.mrb[0].mxu0
    %v321 = vadd.f32 0.0, %v320
    %v322 = vpop.f32.mrb[0].mxu0
    %v323 = vadd.f32 0.0, %v322
    %324 = vdwg.mxu0
    %v325 = vpack.c.bf16 %v291, %v287
    %v326 = vpack.c.bf16 %v293, %v289
    %v327 = vpack.c.bf16 %v301, %v297
    %v328 = vpack.c.bf16 %v303, %v299
    %v329 = vpack.c.bf16 %v311, %v307
    %v330 = vpack.c.bf16 %v313, %v309
    %v331 = vpack.c.bf16 %v321, %v317
    %v332 = vpack.c.bf16 %v323, %v319
    %333 = vst [vmem:[#allocation2] sm:$0xff] %v325
    %334 = vst [vmem:[#allocation2 + $0x8] sm:$0xff] %v326
    %335 = vst [vmem:[#allocation2 + $0x10] sm:$0xff] %v327
    %336 = vst [vmem:[#allocation2 + $0x18] sm:$0xff] %v328
    %337 = vst [vmem:[#allocation2 + $0x20] sm:$0xff] %v329
    %338 = vst [vmem:[#allocation2 + $0x28] sm:$0xff] %v330
    %339 = vst [vmem:[#allocation2 + $0x30] sm:$0xff] %v331
    %340 = vst [vmem:[#allocation2 + $0x38] sm:$0xff] %v332
    %v341 = vld [vmem:[%s1] sm:$0xff]
    %v342 = vld [vmem:[#allocation2] sm:$0xf]
    %v343 = vunpack.c.l.bf16 %v342
    %v344 = vld [vmem:[#allocation2 + $0x38] sm:$0xf0]
    %v346 = vrot.slane %v344, 4
    %v348 = vunpack.c.l.bf16 %v346
    %vm349 = vcmp.gt.s32.totalorder %v341, 0
    %v350 = vld [vmem:[#allocation3] sm:$0xf]
    %v351 = vld [vmem:[#allocation3 + $0x4] sm:$0xf]
    %v352 = vld [vmem:[#allocation3 + $0x8] sm:$0xf]
    %v353 = vld [vmem:[#allocation3 + $0xc] sm:$0xf]
    %v354 = vld [vmem:[#allocation3 + $0x10] sm:$0xf]
    %v355 = vld [vmem:[#allocation3 + $0x14] sm:$0xf]
    %v356 = vld [vmem:[#allocation3 + $0x18] sm:$0xf]
    %v357 = vld [vmem:[#allocation3 + $0x1c] sm:$0xf]
    %v358 = vld [vmem:[#allocation3 + $0x20] sm:$0xf]
    %v359 = vld [vmem:[#allocation3 + $0x24] sm:$0xf]
    %v360 = vld [vmem:[#allocation3 + $0x28] sm:$0xf]
    %v361 = vld [vmem:[#allocation3 + $0x2c] sm:$0xf]
    %v362 = vld [vmem:[#allocation3 + $0x30] sm:$0xf]
    %v363 = vld [vmem:[#allocation3 + $0x34] sm:$0xf]
    %v364 = vld [vmem:[#allocation3 + $0x38] sm:$0xf]
    %v365 = vld [vmem:[#allocation3 + $0x3c] sm:$0xf]
    %v366 = vld [vmem:[%s4] sm:$0x1]
    %v368 = vlaneseq
    %v369 = vshrl.u32 %v368, 7
    %v370 = vsub.s32 0, %v369
    %v371 = vrot.slane %v366, %v370
    %v389 = vunpack.c.l.b16 %v350
    %v390 = vunpack.c.l.b16 %v351
    %v391 = vunpack.c.l.b16 %v352
    %v392 = vunpack.c.l.b16 %v353
    %v393 = vunpack.c.l.b16 %v354
    %v394 = vunpack.c.l.b16 %v355
    %v395 = vunpack.c.l.b16 %v356
    %v396 = vunpack.c.l.b16 %v357
    %v397 = vunpack.c.l.b16 %v358
    %v398 = vunpack.c.l.b16 %v359
    %v399 = vunpack.c.l.b16 %v360
    %v400 = vunpack.c.l.b16 %v361
    %v401 = vunpack.c.l.b16 %v362
    %v402 = vunpack.c.l.b16 %v363
    %v403 = vunpack.c.l.b16 %v364
    %v404 = vunpack.c.l.b16 %v365
    %v405 = vpack.c.b16 %v390, %v389
    %v406 = vpack.c.b16 %v392, %v391
    %v407 = vpack.c.b16 %v394, %v393
    %v408 = vpack.c.b16 %v396, %v395
    %v409 = vpack.c.b16 %v398, %v397
    %v410 = vpack.c.b16 %v400, %v399
    %v411 = vpack.c.b16 %v402, %v401
    %v412 = vpack.c.b16 %v404, %v403
    %421 = vmatprep.subr.bf16.mxu0 0
    %422 = vmatpush1.bf16.msra.mxu0 %v405
    %423 = vmatprep.subr.bf16.mxu0 0
    %424 = vmatpush1.bf16.msra.mxu0 %v406
    %425 = vmatprep.subr.bf16.mxu0 0
    %426 = vmatpush1.bf16.msra.mxu0 %v407
    %427 = vmatprep.subr.bf16.mxu0 0
    %428 = vmatpush1.bf16.msra.mxu0 %v408
    %429 = vmatprep.subr.bf16.mxu0 0
    %430 = vmatpush1.bf16.msra.mxu0 %v409
    %431 = vmatprep.subr.bf16.mxu0 0
    %432 = vmatpush1.bf16.msra.mxu0 %v410
    %433 = vmatprep.subr.bf16.mxu0 0
    %434 = vmatpush1.bf16.msra.mxu0 %v411
    %435 = vmatprep.subr.bf16.mxu0 0
    %436 = vmatpush1.bf16.msra.mxu0 %v412
    %437 = vmatprep.subr.bf16.mxu0 0
    %438 = vmatpush1.bf16.msra.mxu0 0
    %439 = vmatprep.subr.bf16.mxu0 0
    %440 = vmatpush1.bf16.msra.mxu0 0
    %441 = vmatprep.subr.bf16.mxu0 0
    %442 = vmatpush1.bf16.msra.mxu0 0
    %443 = vmatprep.subr.bf16.mxu0 0
    %444 = vmatpush1.bf16.msra.mxu0 0
    %445 = vmatprep.subr.bf16.mxu0 0
    %446 = vmatpush1.bf16.msra.mxu0 0
    %447 = vmatprep.subr.bf16.mxu0 0
    %448 = vmatpush1.bf16.msra.mxu0 0
    %449 = vmatprep.subr.bf16.mxu0 0
    %450 = vmatpush1.bf16.msra.mxu0 0
    %451 = vmatprep.subr.bf16.mxu0 0
    %452 = vmatpush1.bf16.msra.mxu0 0
    %453 = vmatprep.mubr.bf16.mxu0 0
    %454 = vmatmul.mubr.bf16.gmra.mrb[0].mxu0 0
    %v455 = vpop.f32.mrb[0].mxu0
    %v456 = vadd.f32 %v371, %v455
    %v457 = vpop.f32.mrb[0].mxu0
    %v458 = vpop.f32.mrb[0].mxu0
    %v459 = vpop.f32.mrb[0].mxu0
    %460 = vdwg.mxu0
    %v461 = vadd.f32 %v343, %v456
    %v462 = vxor.u32 %v461, 2147483648
    %v463 = vmul.f32 %v462, 1.442695
    %v464 = vpow.pop %v463
    %v465 = vadd.f32 %v464, 1.0
    %v466 = vrcp.pop %v465
    %v467 = vmul.f32 1.0, %v466
    %468 = vrot.lane.b32.xlu0 %v467, 64
    %v469 = vpop.permute.xlu0 %468
    %470 = vrot.lane.b32.xlu0 %v467, 96
    %v471 = vpop.permute.xlu0 %470
    %v472 = vmul.f32 %v469, %v456
    %v473 = vadd.f32 %v343, %v472
    %v474 = vtanh.pop %v473
    %v475 = vsub.f32 1.0, %v471
    %v476 = vmul.f32 %v475, %v474
    %v477 = vmul.f32 %v471, 0.0
    %v478 = vadd.f32 %v476, %v477
    %v479 = vsel %vm349, 1, 0
    %480 = vset.pattern.permute.xlu0 0
    %481 = vperm.xlu0 %480, %v479
    %v482 = vpop.permute.xlu0 %481
    %vm483 = vcmp.eq.s32.totalorder %v482, 1
    %v484 = vsel %vm483, %v478, 0.0
    %vm485 = vcmp.gt.s32.totalorder %v341, 7
    %v486 = vld [vmem:[#allocation5] sm:$0xf]
    %v487 = vld [vmem:[#allocation5 + $0x4] sm:$0xf]
    %v488 = vld [vmem:[#allocation5 + $0x8] sm:$0xf]
    %v489 = vld [vmem:[#allocation5 + $0xc] sm:$0xf]
    %v490 = vld [vmem:[#allocation5 + $0x10] sm:$0xf]
    %v491 = vld [vmem:[#allocation5 + $0x14] sm:$0xf]
    %v492 = vld [vmem:[#allocation5 + $0x18] sm:$0xf]
    %v493 = vld [vmem:[#allocation5 + $0x1c] sm:$0xf]
    %v494 = vld [vmem:[#allocation5 + $0x20] sm:$0xf]
    %v495 = vld [vmem:[#allocation5 + $0x24] sm:$0xf]
    %v496 = vld [vmem:[#allocation5 + $0x28] sm:$0xf]
    %v497 = vld [vmem:[#allocation5 + $0x2c] sm:$0xf]
    %v498 = vld [vmem:[#allocation5 + $0x30] sm:$0xf]
    %v499 = vld [vmem:[#allocation5 + $0x34] sm:$0xf]
    %v500 = vld [vmem:[#allocation5 + $0x38] sm:$0xf]
    %v501 = vld [vmem:[#allocation5 + $0x3c] sm:$0xf]
    %v502 = vld [vmem:[%s6] sm:$0x1]
    %v504 = vlaneseq
    %v505 = vshrl.u32 %v504, 7
    %v506 = vsub.s32 0, %v505
    %v507 = vrot.slane %v502, %v506
    %v525 = vunpack.c.l.b16 %v486
    %v526 = vunpack.c.l.b16 %v487
    %v527 = vunpack.c.l.b16 %v488
    %v528 = vunpack.c.l.b16 %v489
    %v529 = vunpack.c.l.b16 %v490
    %v530 = vunpack.c.l.b16 %v491
    %v531 = vunpack.c.l.b16 %v492
    %v532 = vunpack.c.l.b16 %v493
    %v533 = vunpack.c.l.b16 %v494
    %v534 = vunpack.c.l.b16 %v495
    %v535 = vunpack.c.l.b16 %v496
    %v536 = vunpack.c.l.b16 %v497
    %v537 = vunpack.c.l.b16 %v498
    %v538 = vunpack.c.l.b16 %v499
    %v539 = vunpack.c.l.b16 %v500
    %v540 = vunpack.c.l.b16 %v501
    %v541 = vpack.c.b16 %v526, %v525
    %v542 = vpack.c.b16 %v528, %v527
    %v543 = vpack.c.b16 %v530, %v529
    %v544 = vpack.c.b16 %v532, %v531
    %v545 = vpack.c.b16 %v534, %v533
    %v546 = vpack.c.b16 %v536, %v535
    %v547 = vpack.c.b16 %v538, %v537
    %v548 = vpack.c.b16 %v540, %v539
    %557 = vmatprep.subr.bf16.mxu0 0
    %558 = vmatpush1.bf16.msra.mxu0 %v541
    %559 = vmatprep.subr.bf16.mxu0 0
    %560 = vmatpush1.bf16.msra.mxu0 %v542
    %561 = vmatprep.subr.bf16.mxu0 0
    %562 = vmatpush1.bf16.msra.mxu0 %v543
    %563 = vmatprep.subr.bf16.mxu0 0
    %564 = vmatpush1.bf16.msra.mxu0 %v544
    %565 = vmatprep.subr.bf16.mxu0 0
    %566 = vmatpush1.bf16.msra.mxu0 %v545
    %567 = vmatprep.subr.bf16.mxu0 0
    %568 = vmatpush1.bf16.msra.mxu0 %v546
    %569 = vmatprep.subr.bf16.mxu0 0
    %570 = vmatpush1.bf16.msra.mxu0 %v547
    %571 = vmatprep.subr.bf16.mxu0 0
    %572 = vmatpush1.bf16.msra.mxu0 %v548
    %573 = vmatprep.subr.bf16.mxu0 0
    %574 = vmatpush1.bf16.msra.mxu0 0
    %575 = vmatprep.subr.bf16.mxu0 0
    %576 = vmatpush1.bf16.msra.mxu0 0
    %577 = vmatprep.subr.bf16.mxu0 0
    %578 = vmatpush1.bf16.msra.mxu0 0
    %579 = vmatprep.subr.bf16.mxu0 0
    %580 = vmatpush1.bf16.msra.mxu0 0
    %581 = vmatprep.subr.bf16.mxu0 0
    %582 = vmatpush1.bf16.msra.mxu0 0
    %583 = vmatprep.subr.bf16.mxu0 0
    %584 = vmatpush1.bf16.msra.mxu0 0
    %585 = vmatprep.subr.bf16.mxu0 0
    %586 = vmatpush1.bf16.msra.mxu0 0
    %587 = vmatprep.subr.bf16.mxu0 0
    %588 = vmatpush1.bf16.msra.mxu0 0
    %589 = vmatprep.mubr.bf16.mxu0 0
    %590 = vmatmul.mubr.bf16.gmra.mrb[0].mxu0 0
    %v591 = vpop.f32.mrb[0].mxu0
    %v592 = vadd.f32 %v507, %v591
    %v593 = vpop.f32.mrb[0].mxu0
    %v594 = vpop.f32.mrb[0].mxu0
    %v595 = vpop.f32.mrb[0].mxu0
    %596 = vdwg.mxu0
    %v597 = vadd.f32 %v348, %v592
    %v598 = vxor.u32 %v597, 2147483648
    %v599 = vmul.f32 %v598, 1.442695
    %v600 = vpow.pop %v599
    %v601 = vadd.f32 %v600, 1.0
    %v602 = vrcp.pop %v601
    %v603 = vmul.f32 1.0, %v602
    %604 = vrot.lane.b32.xlu0 %v603, 64
    %v605 = vpop.permute.xlu0 %604
    %606 = vrot.lane.b32.xlu0 %v603, 96
    %v607 = vpop.permute.xlu0 %606
    %v608 = vmul.f32 %v605, %v592
    %v609 = vadd.f32 %v348, %v608
    %v610 = vtanh.pop %v609
    %v611 = vsub.f32 1.0, %v607
    %v612 = vmul.f32 %v611, %v610
    %v613 = vmul.f32 %v607, 0.0
    %v614 = vadd.f32 %v612, %v613
    %v615 = vsel %vm485, 1, 0
    %616 = vset.pattern.permute.xlu0 0
    %617 = vperm.xlu0 %616, %v615
    %v618 = vpop.permute.xlu0 %617
    %vm619 = vcmp.eq.s32.totalorder %v618, 1
    %v620 = vsel %vm619, %v614, 0.0
    %v621 = vld [vmem:[#allocation2] sm:$0xf0]
    %v623 = vrot.slane %v621, 4
    %v625 = vunpack.c.l.bf16 %v623
    %v626 = vld [vmem:[#allocation2 + $0x38] sm:$0xf]
    %v627 = vunpack.c.l.bf16 %v626
    %vm628 = vcmp.gt.s32.totalorder %v341, 1
    %v629 = vpack.c.bf16 %v484, %v484
    %630 = vmatprep.subr.bf16.mxu0 0
    %631 = vmatpush1.bf16.msra.mxu0 %v405
    %632 = vmatprep.subr.bf16.mxu0 0
    %633 = vmatpush1.bf16.msra.mxu0 %v406
    %634 = vmatprep.subr.bf16.mxu0 0
    %635 = vmatpush1.bf16.msra.mxu0 %v407
    %636 = vmatprep.subr.bf16.mxu0 0
    %637 = vmatpush1.bf16.msra.mxu0 %v408
    %638 = vmatprep.subr.bf16.mxu0 0
    %639 = vmatpush1.bf16.msra.mxu0 %v409
    %640 = vmatprep.subr.bf16.mxu0 0
    %641 = vmatpush1.bf16.msra.mxu0 %v410
    %642 = vmatprep.subr.bf16.mxu0 0
    %643 = vmatpush1.bf16.msra.mxu0 %v411
    %644 = vmatprep.subr.bf16.mxu0 0
    %645 = vmatpush1.bf16.msra.mxu0 %v412
    %646 = vmatprep.subr.bf16.mxu0 0
    %647 = vmatpush1.bf16.msra.mxu0 0
    %648 = vmatprep.subr.bf16.mxu0 0
    %649 = vmatpush1.bf16.msra.mxu0 0
    %650 = vmatprep.subr.bf16.mxu0 0
    %651 = vmatpush1.bf16.msra.mxu0 0
    %652 = vmatprep.subr.bf16.mxu0 0
    %653 = vmatpush1.bf16.msra.mxu0 0
    %654 = vmatprep.subr.bf16.mxu0 0
    %655 = vmatpush1.bf16.msra.mxu0 0
    %656 = vmatprep.subr.bf16.mxu0 0
    %657 = vmatpush1.bf16.msra.mxu0 0
    %658 = vmatprep.subr.bf16.mxu0 0
    %659 = vmatpush1.bf16.msra.mxu0 0
    %660 = vmatprep.subr.bf16.mxu0 0
    %661 = vmatpush1.bf16.msra.mxu0 0
    %662 = vmatprep.mubr.bf16.mxu0 0
    %663 = vmatmul.mubr.bf16.gmra.mrb[0].mxu0 %v629
    %v664 = vpop.f32.mrb[0].mxu0
    %v665 = vadd.f32 %v371, %v664
    %v666 = vpop.f32.mrb[0].mxu0
    %v667 = vpop.f32.mrb[0].mxu0
    %v668 = vpop.f32.mrb[0].mxu0
    %669 = vdwg.mxu0
    %v670 = vadd.f32 %v625, %v665
    %v671 = vxor.u32 %v670, 2147483648
    %v672 = vmul.f32 %v671, 1.442695
    %v673 = vpow.pop %v672
    %v674 = vadd.f32 %v673, 1.0
    %v675 = vrcp.pop %v674
    %v676 = vmul.f32 1.0, %v675
    %677 = vrot.lane.b32.xlu0 %v676, 64
    %v678 = vpop.permute.xlu0 %677
    %679 = vrot.lane.b32.xlu0 %v676, 96
    %v680 = vpop.permute.xlu0 %679
    %v681 = vmul.f32 %v678, %v665
    %v682 = vadd.f32 %v625, %v681
    %v683 = vtanh.pop %v682
    %v684 = vsub.f32 1.0, %v680
    %v685 = vmul.f32 %v684, %v683
    %v686 = vmul.f32 %v680, %v484
    %v687 = vadd.f32 %v685, %v686
    %v688 = vsel %vm628, 1, 0
    %689 = vset.pattern.permute.xlu0 0
    %690 = vperm.xlu0 %689, %v688
    %v691 = vpop.permute.xlu0 %690
    %vm692 = vcmp.eq.s32.totalorder %v691, 1
    %v693 = vsel %vm692, %v687, %v484
    %vm694 = vcmp.gt.s32.totalorder %v341, 6
    %v695 = vpack.c.bf16 %v620, %v620
    %696 = vmatprep.subr.bf16.mxu0 0
    %697 = vmatpush1.bf16.msra.mxu0 %v541
    %698 = vmatprep.subr.bf16.mxu0 0
    %699 = vmatpush1.bf16.msra.mxu0 %v542
    %700 = vmatprep.subr.bf16.mxu0 0
    %701 = vmatpush1.bf16.msra.mxu0 %v543
    %702 = vmatprep.subr.bf16.mxu0 0
    %703 = vmatpush1.bf16.msra.mxu0 %v544
    %704 = vmatprep.subr.bf16.mxu0 0
    %705 = vmatpush1.bf16.msra.mxu0 %v545
    %706 = vmatprep.subr.bf16.mxu0 0
    %707 = vmatpush1.bf16.msra.mxu0 %v546
    %708 = vmatprep.subr.bf16.mxu0 0
    %709 = vmatpush1.bf16.msra.mxu0 %v547
    %710 = vmatprep.subr.bf16.mxu0 0
    %711 = vmatpush1.bf16.msra.mxu0 %v548
    %712 = vmatprep.subr.bf16.mxu0 0
    %713 = vmatpush1.bf16.msra.mxu0 0
    %714 = vmatprep.subr.bf16.mxu0 0
    %715 = vmatpush1.bf16.msra.mxu0 0
    %716 = vmatprep.subr.bf16.mxu0 0
    %717 = vmatpush1.bf16.msra.mxu0 0
    %718 = vmatprep.subr.bf16.mxu0 0
    %719 = vmatpush1.bf16.msra.mxu0 0
    %720 = vmatprep.subr.bf16.mxu0 0
    %721 = vmatpush1.bf16.msra.mxu0 0
    %722 = vmatprep.subr.bf16.mxu0 0
    %723 = vmatpush1.bf16.msra.mxu0 0
    %724 = vmatprep.subr.bf16.mxu0 0
    %725 = vmatpush1.bf16.msra.mxu0 0
    %726 = vmatprep.subr.bf16.mxu0 0
    %727 = vmatpush1.bf16.msra.mxu0 0
    %728 = vmatprep.mubr.bf16.mxu0 0
    %729 = vmatmul.mubr.bf16.gmra.mrb[0].mxu0 %v695
    %v730 = vpop.f32.mrb[0].mxu0
    %v731 = vadd.f32 %v507, %v730
    %v732 = vpop.f32.mrb[0].mxu0
    %v733 = vpop.f32.mrb[0].mxu0
    %v734 = vpop.f32.mrb[0].mxu0
    %735 = vdwg.mxu0
    %v736 = vadd.f32 %v627, %v731
    %v737 = vxor.u32 %v736, 2147483648
    %v738 = vmul.f32 %v737, 1.442695
    %v739 = vpow.pop %v738
    %v740 = vadd.f32 %v739, 1.0
    %v741 = vrcp.pop %v740
    %v742 = vmul.f32 1.0, %v741
    %743 = vrot.lane.b32.xlu0 %v742, 64
    %v744 = vpop.permute.xlu0 %743
    %745 = vrot.lane.b32.xlu0 %v742, 96
    %v746 = vpop.permute.xlu0 %745
    %v747 = vmul.f32 %v744, %v731
    %v748 = vadd.f32 %v627, %v747
    %v749 = vtanh.pop %v748
    %v750 = vsub.f32 1.0, %v746
    %v751 = vmul.f32 %v750, %v749
    %v752 = vmul.f32 %v746, %v620
    %v753 = vadd.f32 %v751, %v752
    %v754 = vsel %vm694, 1, 0
    %755 = vset.pattern.permute.xlu0 0
    %756 = vperm.xlu0 %755, %v754
    %v757 = vpop.permute.xlu0 %756
    %vm758 = vcmp.eq.s32.totalorder %v757, 1
    %v759 = vsel %vm758, %v753, %v620
    %v760 = vld [vmem:[#allocation2 + $0x10] sm:$0xf]
    %v761 = vunpack.c.l.bf16 %v760
    %v762 = vld [vmem:[#allocation2 + $0x28] sm:$0xf0]
    %v764 = vrot.slane %v762, 4
    %v766 = vunpack.c.l.bf16 %v764
    %vm767 = vcmp.gt.s32.totalorder %v341, 2
    %v768 = vpack.c.bf16 %v693, %v693
    %769 = vmatprep.subr.bf16.mxu0 0
    %770 = vmatpush1.bf16.msra.mxu0 %v405
    %771 = vmatprep.subr.bf16.mxu0 0
    %772 = vmatpush1.bf16.msra.mxu0 %v406
    %773 = vmatprep.subr.bf16.mxu0 0
    %774 = vmatpush1.bf16.msra.mxu0 %v407
    %775 = vmatprep.subr.bf16.mxu0 0
    %776 = vmatpush1.bf16.msra.mxu0 %v408
    %777 = vmatprep.subr.bf16.mxu0 0
    %778 = vmatpush1.bf16.msra.mxu0 %v409
    %779 = vmatprep.subr.bf16.mxu0 0
    %780 = vmatpush1.bf16.msra.mxu0 %v410
    %781 = vmatprep.subr.bf16.mxu0 0
    %782 = vmatpush1.bf16.msra.mxu0 %v411
    %783 = vmatprep.subr.bf16.mxu0 0
    %784 = vmatpush1.bf16.msra.mxu0 %v412
    %785 = vmatprep.subr.bf16.mxu0 0
    %786 = vmatpush1.bf16.msra.mxu0 0
    %787 = vmatprep.subr.bf16.mxu0 0
    %788 = vmatpush1.bf16.msra.mxu0 0
    %789 = vmatprep.subr.bf16.mxu0 0
    %790 = vmatpush1.bf16.msra.mxu0 0
    %791 = vmatprep.subr.bf16.mxu0 0
    %792 = vmatpush1.bf16.msra.mxu0 0
    %793 = vmatprep.subr.bf16.mxu0 0
    %794 = vmatpush1.bf16.msra.mxu0 0
    %795 = vmatprep.subr.bf16.mxu0 0
    %796 = vmatpush1.bf16.msra.mxu0 0
    %797 = vmatprep.subr.bf16.mxu0 0
    %798 = vmatpush1.bf16.msra.mxu0 0
    %799 = vmatprep.subr.bf16.mxu0 0
    %800 = vmatpush1.bf16.msra.mxu0 0
    %801 = vmatprep.mubr.bf16.mxu0 0
    %802 = vmatmul.mubr.bf16.gmra.mrb[0].mxu0 %v768
    %v803 = vpop.f32.mrb[0].mxu0
    %v804 = vadd.f32 %v371, %v803
    %v805 = vpop.f32.mrb[0].mxu0
    %v806 = vpop.f32.mrb[0].mxu0
    %v807 = vpop.f32.mrb[0].mxu0
    %808 = vdwg.mxu0
    %v809 = vadd.f32 %v761, %v804
    %v810 = vxor.u32 %v809, 2147483648
    %v811 = vmul.f32 %v810, 1.442695
    %v812 = vpow.pop %v811
    %v813 = vadd.f32 %v812, 1.0
    %v814 = vrcp.pop %v813
    %v815 = vmul.f32 1.0, %v814
    %816 = vrot.lane.b32.xlu0 %v815, 64
    %v817 = vpop.permute.xlu0 %816
    %818 = vrot.lane.b32.xlu0 %v815, 96
    %v819 = vpop.permute.xlu0 %818
    %v820 = vmul.f32 %v817, %v804
    %v821 = vadd.f32 %v761, %v820
    %v822 = vtanh.pop %v821
    %v823 = vsub.f32 1.0, %v819
    %v824 = vmul.f32 %v823, %v822
    %v825 = vmul.f32 %v819, %v693
    %v826 = vadd.f32 %v824, %v825
    %v827 = vsel %vm767, 1, 0
    %828 = vset.pattern.permute.xlu0 0
    %829 = vperm.xlu0 %828, %v827
    %v830 = vpop.permute.xlu0 %829
    %vm831 = vcmp.eq.s32.totalorder %v830, 1
    %v832 = vsel %vm831, %v826, %v693
    %vm833 = vcmp.gt.s32.totalorder %v341, 5
    %v834 = vpack.c.bf16 %v759, %v759
    %835 = vmatprep.subr.bf16.mxu0 0
    %836 = vmatpush1.bf16.msra.mxu0 %v541
    %837 = vmatprep.subr.bf16.mxu0 0
    %838 = vmatpush1.bf16.msra.mxu0 %v542
    %839 = vmatprep.subr.bf16.mxu0 0
    %840 = vmatpush1.bf16.msra.mxu0 %v543
    %841 = vmatprep.subr.bf16.mxu0 0
    %842 = vmatpush1.bf16.msra.mxu0 %v544
    %843 = vmatprep.subr.bf16.mxu0 0
    %844 = vmatpush1.bf16.msra.mxu0 %v545
    %845 = vmatprep.subr.bf16.mxu0 0
    %846 = vmatpush1.bf16.msra.mxu0 %v546
    %847 = vmatprep.subr.bf16.mxu0 0
    %848 = vmatpush1.bf16.msra.mxu0 %v547
    %849 = vmatprep.subr.bf16.mxu0 0
    %850 = vmatpush1.bf16.msra.mxu0 %v548
    %851 = vmatprep.subr.bf16.mxu0 0
    %852 = vmatpush1.bf16.msra.mxu0 0
    %853 = vmatprep.subr.bf16.mxu0 0
    %854 = vmatpush1.bf16.msra.mxu0 0
    %855 = vmatprep.subr.bf16.mxu0 0
    %856 = vmatpush1.bf16.msra.mxu0 0
    %857 = vmatprep.subr.bf16.mxu0 0
    %858 = vmatpush1.bf16.msra.mxu0 0
    %859 = vmatprep.subr.bf16.mxu0 0
    %860 = vmatpush1.bf16.msra.mxu0 0
    %861 = vmatprep.subr.bf16.mxu0 0
    %862 = vmatpush1.bf16.msra.mxu0 0
    %863 = vmatprep.subr.bf16.mxu0 0
    %864 = vmatpush1.bf16.msra.mxu0 0
    %865 = vmatprep.subr.bf16.mxu0 0
    %866 = vmatpush1.bf16.msra.mxu0 0
    %867 = vmatprep.mubr.bf16.mxu0 0
    %868 = vmatmul.mubr.bf16.gmra.mrb[0].mxu0 %v834
    %v869 = vpop.f32.mrb[0].mxu0
    %v870 = vadd.f32 %v507, %v869
    %v871 = vpop.f32.mrb[0].mxu0
    %v872 = vpop.f32.mrb[0].mxu0
    %v873 = vpop.f32.mrb[0].mxu0
    %874 = vdwg.mxu0
    %v875 = vadd.f32 %v766, %v870
    %v876 = vxor.u32 %v875, 2147483648
    %v877 = vmul.f32 %v876, 1.442695
    %v878 = vpow.pop %v877
    %v879 = vadd.f32 %v878, 1.0
    %v880 = vrcp.pop %v879
    %v881 = vmul.f32 1.0, %v880
    %882 = vrot.lane.b32.xlu0 %v881, 64
    %v883 = vpop.permute.xlu0 %882
    %884 = vrot.lane.b32.xlu0 %v881, 96
    %v885 = vpop.permute.xlu0 %884
    %v886 = vmul.f32 %v883, %v870
    %v887 = vadd.f32 %v766, %v886
    %v888 = vtanh.pop %v887
    %v889 = vsub.f32 1.0, %v885
    %v890 = vmul.f32 %v889, %v888
    %v891 = vmul.f32 %v885, %v759
    %v892 = vadd.f32 %v890, %v891
    %v893 = vsel %vm833, 1, 0
    %894 = vset.pattern.permute.xlu0 0
    %895 = vperm.xlu0 %894, %v893
    %v896 = vpop.permute.xlu0 %895
    %vm897 = vcmp.eq.s32.totalorder %v896, 1
    %v898 = vsel %vm897, %v892, %v759
    %v899 = vld [vmem:[#allocation2 + $0x10] sm:$0xf0]
    %v901 = vrot.slane %v899, 4
    %v903 = vunpack.c.l.bf16 %v901
    %v904 = vld [vmem:[#allocation2 + $0x28] sm:$0xf]
    %v905 = vunpack.c.l.bf16 %v904
    %vm906 = vcmp.gt.s32.totalorder %v341, 3
    %v907 = vpack.c.bf16 %v832, %v832
    %908 = vmatprep.subr.bf16.mxu0 0
    %909 = vmatpush1.bf16.msra.mxu0 %v405
    %910 = vmatprep.subr.bf16.mxu0 0
    %911 = vmatpush1.bf16.msra.mxu0 %v406
    %912 = vmatprep.subr.bf16.mxu0 0
    %913 = vmatpush1.bf16.msra.mxu0 %v407
    %914 = vmatprep.subr.bf16.mxu0 0
    %915 = vmatpush1.bf16.msra.mxu0 %v408
    %916 = vmatprep.subr.bf16.mxu0 0
    %917 = vmatpush1.bf16.msra.mxu0 %v409
    %918 = vmatprep.subr.bf16.mxu0 0
    %919 = vmatpush1.bf16.msra.mxu0 %v410
    %920 = vmatprep.subr.bf16.mxu0 0
    %921 = vmatpush1.bf16.msra.mxu0 %v411
    %922 = vmatprep.subr.bf16.mxu0 0
    %923 = vmatpush1.bf16.msra.mxu0 %v412
    %924 = vmatprep.subr.bf16.mxu0 0
    %925 = vmatpush1.bf16.msra.mxu0 0
    %926 = vmatprep.subr.bf16.mxu0 0
    %927 = vmatpush1.bf16.msra.mxu0 0
    %928 = vmatprep.subr.bf16.mxu0 0
    %929 = vmatpush1.bf16.msra.mxu0 0
    %930 = vmatprep.subr.bf16.mxu0 0
    %931 = vmatpush1.bf16.msra.mxu0 0
    %932 = vmatprep.subr.bf16.mxu0 0
    %933 = vmatpush1.bf16.msra.mxu0 0
    %934 = vmatprep.subr.bf16.mxu0 0
    %935 = vmatpush1.bf16.msra.mxu0 0
    %936 = vmatprep.subr.bf16.mxu0 0
    %937 = vmatpush1.bf16.msra.mxu0 0
    %938 = vmatprep.subr.bf16.mxu0 0
    %939 = vmatpush1.bf16.msra.mxu0 0
    %940 = vmatprep.mubr.bf16.mxu0 0
    %941 = vmatmul.mubr.bf16.gmra.mrb[0].mxu0 %v907
    %v942 = vpop.f32.mrb[0].mxu0
    %v943 = vadd.f32 %v371, %v942
    %v944 = vpop.f32.mrb[0].mxu0
    %v945 = vpop.f32.mrb[0].mxu0
    %v946 = vpop.f32.mrb[0].mxu0
    %947 = vdwg.mxu0
    %v948 = vadd.f32 %v903, %v943
    %v949 = vxor.u32 %v948, 2147483648
    %v950 = vmul.f32 %v949, 1.442695
    %v951 = vpow.pop %v950
    %v952 = vadd.f32 %v951, 1.0
    %v953 = vrcp.pop %v952
    %v954 = vmul.f32 1.0, %v953
    %955 = vrot.lane.b32.xlu0 %v954, 64
    %v956 = vpop.permute.xlu0 %955
    %957 = vrot.lane.b32.xlu0 %v954, 96
    %v958 = vpop.permute.xlu0 %957
    %v959 = vmul.f32 %v956, %v943
    %v960 = vadd.f32 %v903, %v959
    %v961 = vtanh.pop %v960
    %v962 = vsub.f32 1.0, %v958
    %v963 = vmul.f32 %v962, %v961
    %v964 = vmul.f32 %v958, %v832
    %v965 = vadd.f32 %v963, %v964
    %v966 = vsel %vm906, 1, 0
    %967 = vset.pattern.permute.xlu0 0
    %968 = vperm.xlu0 %967, %v966
    %v969 = vpop.permute.xlu0 %968
    %vm970 = vcmp.eq.s32.totalorder %v969, 1
    %v971 = vsel %vm970, %v965, %v832
    %vm972 = vcmp.gt.s32.totalorder %v341, 4
    %v973 = vpack.c.bf16 %v898, %v898
    %974 = vmatprep.subr.bf16.mxu0 0
    %975 = vmatpush1.bf16.msra.mxu0 %v541
    %976 = vmatprep.subr.bf16.mxu0 0
    %977 = vmatpush1.bf16.msra.mxu0 %v542
    %978 = vmatprep.subr.bf16.mxu0 0
    %979 = vmatpush1.bf16.msra.mxu0 %v543
    %980 = vmatprep.subr.bf16.mxu0 0
    %981 = vmatpush1.bf16.msra.mxu0 %v544
    %982 = vmatprep.subr.bf16.mxu0 0
    %983 = vmatpush1.bf16.msra.mxu0 %v545
    %984 = vmatprep.subr.bf16.mxu0 0
    %985 = vmatpush1.bf16.msra.mxu0 %v546
    %986 = vmatprep.subr.bf16.mxu0 0
    %987 = vmatpush1.bf16.msra.mxu0 %v547
    %988 = vmatprep.subr.bf16.mxu0 0
    %989 = vmatpush1.bf16.msra.mxu0 %v548
    %990 = vmatprep.subr.bf16.mxu0 0
    %991 = vmatpush1.bf16.msra.mxu0 0
    %992 = vmatprep.subr.bf16.mxu0 0
    %993 = vmatpush1.bf16.msra.mxu0 0
    %994 = vmatprep.subr.bf16.mxu0 0
    %995 = vmatpush1.bf16.msra.mxu0 0
    %996 = vmatprep.subr.bf16.mxu0 0
    %997 = vmatpush1.bf16.msra.mxu0 0
    %998 = vmatprep.subr.bf16.mxu0 0
    %999 = vmatpush1.bf16.msra.mxu0 0
    %1000 = vmatprep.subr.bf16.mxu0 0
    %1001 = vmatpush1.bf16.msra.mxu0 0
    %1002 = vmatprep.subr.bf16.mxu0 0
    %1003 = vmatpush1.bf16.msra.mxu0 0
    %1004 = vmatprep.subr.bf16.mxu0 0
    %1005 = vmatpush1.bf16.msra.mxu0 0
    %1006 = vmatprep.mubr.bf16.mxu0 0
    %1007 = vmatmul.mubr.bf16.gmra.mrb[0].mxu0 %v973
    %v1008 = vpop.f32.mrb[0].mxu0
    %v1009 = vadd.f32 %v507, %v1008
    %v1010 = vpop.f32.mrb[0].mxu0
    %v1011 = vpop.f32.mrb[0].mxu0
    %v1012 = vpop.f32.mrb[0].mxu0
    %1013 = vdwg.mxu0
    %v1014 = vadd.f32 %v905, %v1009
    %v1015 = vxor.u32 %v1014, 2147483648
    %v1016 = vmul.f32 %v1015, 1.442695
    %v1017 = vpow.pop %v1016
    %v1018 = vadd.f32 %v1017, 1.0
    %v1019 = vrcp.pop %v1018
    %v1020 = vmul.f32 1.0, %v1019
    %1021 = vrot.lane.b32.xlu0 %v1020, 64
    %v1022 = vpop.permute.xlu0 %1021
    %1023 = vrot.lane.b32.xlu0 %v1020, 96
    %v1024 = vpop.permute.xlu0 %1023
    %v1025 = vmul.f32 %v1022, %v1009
    %v1026 = vadd.f32 %v905, %v1025
    %v1027 = vtanh.pop %v1026
    %v1028 = vsub.f32 1.0, %v1024
    %v1029 = vmul.f32 %v1028, %v1027
    %v1030 = vmul.f32 %v1024, %v898
    %v1031 = vadd.f32 %v1029, %v1030
    %v1032 = vsel %vm972, 1, 0
    %1033 = vset.pattern.permute.xlu0 0
    %1034 = vperm.xlu0 %1033, %v1032
    %v1035 = vpop.permute.xlu0 %1034
    %vm1036 = vcmp.eq.s32.totalorder %v1035, 1
    %v1037 = vsel %vm1036, %v1031, %v898
    %v1038 = vld [vmem:[#allocation2 + $0x20] sm:$0xf]
    %v1039 = vunpack.c.l.bf16 %v1038
    %v1040 = vld [vmem:[#allocation2 + $0x18] sm:$0xf0]
    %v1042 = vrot.slane %v1040, 4
    %v1044 = vunpack.c.l.bf16 %v1042
    %v1045 = vpack.c.bf16 %v971, %v971
    %1046 = vmatprep.subr.bf16.mxu0 0
    %1047 = vmatpush1.bf16.msra.mxu0 %v405
    %1048 = vmatprep.subr.bf16.mxu0 0
    %1049 = vmatpush1.bf16.msra.mxu0 %v406
    %1050 = vmatprep.subr.bf16.mxu0 0
    %1051 = vmatpush1.bf16.msra.mxu0 %v407
    %1052 = vmatprep.subr.bf16.mxu0 0
    %1053 = vmatpush1.bf16.msra.mxu0 %v408
    %1054 = vmatprep.subr.bf16.mxu0 0
    %1055 = vmatpush1.bf16.msra.mxu0 %v409
    %1056 = vmatprep.subr.bf16.mxu0 0
    %1057 = vmatpush1.bf16.msra.mxu0 %v410
    %1058 = vmatprep.subr.bf16.mxu0 0
    %1059 = vmatpush1.bf16.msra.mxu0 %v411
    %1060 = vmatprep.subr.bf16.mxu0 0
    %1061 = vmatpush1.bf16.msra.mxu0 %v412
    %1062 = vmatprep.subr.bf16.mxu0 0
    %1063 = vmatpush1.bf16.msra.mxu0 0
    %1064 = vmatprep.subr.bf16.mxu0 0
    %1065 = vmatpush1.bf16.msra.mxu0 0
    %1066 = vmatprep.subr.bf16.mxu0 0
    %1067 = vmatpush1.bf16.msra.mxu0 0
    %1068 = vmatprep.subr.bf16.mxu0 0
    %1069 = vmatpush1.bf16.msra.mxu0 0
    %1070 = vmatprep.subr.bf16.mxu0 0
    %1071 = vmatpush1.bf16.msra.mxu0 0
    %1072 = vmatprep.subr.bf16.mxu0 0
    %1073 = vmatpush1.bf16.msra.mxu0 0
    %1074 = vmatprep.subr.bf16.mxu0 0
    %1075 = vmatpush1.bf16.msra.mxu0 0
    %1076 = vmatprep.subr.bf16.mxu0 0
    %1077 = vmatpush1.bf16.msra.mxu0 0
    %1078 = vmatprep.mubr.bf16.mxu0 0
    %1079 = vmatmul.mubr.bf16.gmra.mrb[0].mxu0 %v1045
    %v1080 = vpop.f32.mrb[0].mxu0
    %v1081 = vadd.f32 %v371, %v1080
    %v1082 = vpop.f32.mrb[0].mxu0
    %v1083 = vpop.f32.mrb[0].mxu0
    %v1084 = vpop.f32.mrb[0].mxu0
    %1085 = vdwg.mxu0
    %v1086 = vadd.f32 %v1039, %v1081
    %v1087 = vxor.u32 %v1086, 2147483648
    %v1088 = vmul.f32 %v1087, 1.442695
    %v1089 = vpow.pop %v1088
    %v1090 = vadd.f32 %v1089, 1.0
    %v1091 = vrcp.pop %v1090
    %v1092 = vmul.f32 1.0, %v1091
    %1093 = vrot.lane.b32.xlu0 %v1092, 64
    %v1094 = vpop.permute.xlu0 %1093
    %1095 = vrot.lane.b32.xlu0 %v1092, 96
    %v1096 = vpop.permute.xlu0 %1095
    %v1097 = vmul.f32 %v1094, %v1081
    %v1098 = vadd.f32 %v1039, %v1097
    %v1099 = vtanh.pop %v1098
    %v1100 = vsub.f32 1.0, %v1096
    %v1101 = vmul.f32 %v1100, %v1099
    %v1102 = vmul.f32 %v1096, %v971
    %v1103 = vadd.f32 %v1101, %v1102
    %v1104 = vsel %vm1036, %v1103, %v971
    %v1105 = vpack.c.bf16 %v1037, %v1037
    %1106 = vmatprep.subr.bf16.mxu0 0
    %1107 = vmatpush1.bf16.msra.mxu0 %v541
    %1108 = vmatprep.subr.bf16.mxu0 0
    %1109 = vmatpush1.bf16.msra.mxu0 %v542
    %1110 = vmatprep.subr.bf16.mxu0 0
    %1111 = vmatpush1.bf16.msra.mxu0 %v543
    %1112 = vmatprep.subr.bf16.mxu0 0
    %1113 = vmatpush1.bf16.msra.mxu0 %v544
    %1114 = vmatprep.subr.bf16.mxu0 0
    %1115 = vmatpush1.bf16.msra.mxu0 %v545
    %1116 = vmatprep.subr.bf16.mxu0 0
    %1117 = vmatpush1.bf16.msra.mxu0 %v546
    %1118 = vmatprep.subr.bf16.mxu0 0
    %1119 = vmatpush1.bf16.msra.mxu0 %v547
    %1120 = vmatprep.subr.bf16.mxu0 0
    %1121 = vmatpush1.bf16.msra.mxu0 %v548
    %1122 = vmatprep.subr.bf16.mxu0 0
    %1123 = vmatpush1.bf16.msra.mxu0 0
    %1124 = vmatprep.subr.bf16.mxu0 0
    %1125 = vmatpush1.bf16.msra.mxu0 0
    %1126 = vmatprep.subr.bf16.mxu0 0
    %1127 = vmatpush1.bf16.msra.mxu0 0
    %1128 = vmatprep.subr.bf16.mxu0 0
    %1129 = vmatpush1.bf16.msra.mxu0 0
    %1130 = vmatprep.subr.bf16.mxu0 0
    %1131 = vmatpush1.bf16.msra.mxu0 0
    %1132 = vmatprep.subr.bf16.mxu0 0
    %1133 = vmatpush1.bf16.msra.mxu0 0
    %1134 = vmatprep.subr.bf16.mxu0 0
    %1135 = vmatpush1.bf16.msra.mxu0 0
    %1136 = vmatprep.subr.bf16.mxu0 0
    %1137 = vmatpush1.bf16.msra.mxu0 0
    %1138 = vmatprep.mubr.bf16.mxu0 0
    %1139 = vmatmul.mubr.bf16.gmra.mrb[0].mxu0 %v1105
    %v1140 = vpop.f32.mrb[0].mxu0
    %v1141 = vadd.f32 %v507, %v1140
    %v1142 = vpop.f32.mrb[0].mxu0
    %v1143 = vpop.f32.mrb[0].mxu0
    %v1144 = vpop.f32.mrb[0].mxu0
    %1145 = vdwg.mxu0
    %v1146 = vadd.f32 %v1044, %v1141
    %v1147 = vxor.u32 %v1146, 2147483648
    %v1148 = vmul.f32 %v1147, 1.442695
    %v1149 = vpow.pop %v1148
    %v1150 = vadd.f32 %v1149, 1.0
    %v1151 = vrcp.pop %v1150
    %v1152 = vmul.f32 1.0, %v1151
    %1153 = vrot.lane.b32.xlu0 %v1152, 64
    %v1154 = vpop.permute.xlu0 %1153
    %1155 = vrot.lane.b32.xlu0 %v1152, 96
    %v1156 = vpop.permute.xlu0 %1155
    %v1157 = vmul.f32 %v1154, %v1141
    %v1158 = vadd.f32 %v1044, %v1157
    %v1159 = vtanh.pop %v1158
    %v1160 = vsub.f32 1.0, %v1156
    %v1161 = vmul.f32 %v1160, %v1159
    %v1162 = vmul.f32 %v1156, %v1037
    %v1163 = vadd.f32 %v1161, %v1162
    %v1164 = vsel %vm970, %v1163, %v1037
    %v1165 = vld [vmem:[#allocation2 + $0x20] sm:$0xf0]
    %v1167 = vrot.slane %v1165, 4
    %v1169 = vunpack.c.l.bf16 %v1167
    %v1170 = vld [vmem:[#allocation2 + $0x18] sm:$0xf]
    %v1171 = vunpack.c.l.bf16 %v1170
    %v1172 = vpack.c.bf16 %v1104, %v1104
    %1173 = vmatprep.subr.bf16.mxu0 0
    %1174 = vmatpush1.bf16.msra.mxu0 %v405
    %1175 = vmatprep.subr.bf16.mxu0 0
    %1176 = vmatpush1.bf16.msra.mxu0 %v406
    %1177 = vmatprep.subr.bf16.mxu0 0
    %1178 = vmatpush1.bf16.msra.mxu0 %v407
    %1179 = vmatprep.subr.bf16.mxu0 0
    %1180 = vmatpush1.bf16.msra.mxu0 %v408
    %1181 = vmatprep.subr.bf16.mxu0 0
    %1182 = vmatpush1.bf16.msra.mxu0 %v409
    %1183 = vmatprep.subr.bf16.mxu0 0
    %1184 = vmatpush1.bf16.msra.mxu0 %v410
    %1185 = vmatprep.subr.bf16.mxu0 0
    %1186 = vmatpush1.bf16.msra.mxu0 %v411
    %1187 = vmatprep.subr.bf16.mxu0 0
    %1188 = vmatpush1.bf16.msra.mxu0 %v412
    %1189 = vmatprep.subr.bf16.mxu0 0
    %1190 = vmatpush1.bf16.msra.mxu0 0
    %1191 = vmatprep.subr.bf16.mxu0 0
    %1192 = vmatpush1.bf16.msra.mxu0 0
    %1193 = vmatprep.subr.bf16.mxu0 0
    %1194 = vmatpush1.bf16.msra.mxu0 0
    %1195 = vmatprep.subr.bf16.mxu0 0
    %1196 = vmatpush1.bf16.msra.mxu0 0
    %1197 = vmatprep.subr.bf16.mxu0 0
    %1198 = vmatpush1.bf16.msra.mxu0 0
    %1199 = vmatprep.subr.bf16.mxu0 0
    %1200 = vmatpush1.bf16.msra.mxu0 0
    %1201 = vmatprep.subr.bf16.mxu0 0
    %1202 = vmatpush1.bf16.msra.mxu0 0
    %1203 = vmatprep.subr.bf16.mxu0 0
    %1204 = vmatpush1.bf16.msra.mxu0 0
    %1205 = vmatprep.mubr.bf16.mxu0 0
    %1206 = vmatmul.mubr.bf16.gmra.mrb[0].mxu0 %v1172
    %v1207 = vpop.f32.mrb[0].mxu0
    %v1208 = vadd.f32 %v371, %v1207
    %v1209 = vpop.f32.mrb[0].mxu0
    %v1210 = vpop.f32.mrb[0].mxu0
    %v1211 = vpop.f32.mrb[0].mxu0
    %1212 = vdwg.mxu0
    %v1213 = vadd.f32 %v1169, %v1208
    %v1214 = vxor.u32 %v1213, 2147483648
    %v1215 = vmul.f32 %v1214, 1.442695
    %v1216 = vpow.pop %v1215
    %v1217 = vadd.f32 %v1216, 1.0
    %v1218 = vrcp.pop %v1217
    %v1219 = vmul.f32 1.0, %v1218
    %1220 = vrot.lane.b32.xlu0 %v1219, 64
    %v1221 = vpop.permute.xlu0 %1220
    %1222 = vrot.lane.b32.xlu0 %v1219, 96
    %v1223 = vpop.permute.xlu0 %1222
    %v1224 = vmul.f32 %v1221, %v1208
    %v1225 = vadd.f32 %v1169, %v1224
    %v1226 = vtanh.pop %v1225
    %v1227 = vsub.f32 1.0, %v1223
    %v1228 = vmul.f32 %v1227, %v1226
    %v1229 = vmul.f32 %v1223, %v1104
    %v1230 = vadd.f32 %v1228, %v1229
    %v1231 = vsel %vm897, %v1230, %v1104
    %v1232 = vpack.c.bf16 %v1164, %v1164
    %1233 = vmatprep.subr.bf16.mxu0 0
    %1234 = vmatpush1.bf16.msra.mxu0 %v541
    %1235 = vmatprep.subr.bf16.mxu0 0
    %1236 = vmatpush1.bf16.msra.mxu0 %v542
    %1237 = vmatprep.subr.bf16.mxu0 0
    %1238 = vmatpush1.bf16.msra.mxu0 %v543
    %1239 = vmatprep.subr.bf16.mxu0 0
    %1240 = vmatpush1.bf16.msra.mxu0 %v544
    %1241 = vmatprep.subr.bf16.mxu0 0
    %1242 = vmatpush1.bf16.msra.mxu0 %v545
    %1243 = vmatprep.subr.bf16.mxu0 0
    %1244 = vmatpush1.bf16.msra.mxu0 %v546
    %1245 = vmatprep.subr.bf16.mxu0 0
    %1246 = vmatpush1.bf16.msra.mxu0 %v547
    %1247 = vmatprep.subr.bf16.mxu0 0
    %1248 = vmatpush1.bf16.msra.mxu0 %v548
    %1249 = vmatprep.subr.bf16.mxu0 0
    %1250 = vmatpush1.bf16.msra.mxu0 0
    %1251 = vmatprep.subr.bf16.mxu0 0
    %1252 = vmatpush1.bf16.msra.mxu0 0
    %1253 = vmatprep.subr.bf16.mxu0 0
    %1254 = vmatpush1.bf16.msra.mxu0 0
    %1255 = vmatprep.subr.bf16.mxu0 0
    %1256 = vmatpush1.bf16.msra.mxu0 0
    %1257 = vmatprep.subr.bf16.mxu0 0
    %1258 = vmatpush1.bf16.msra.mxu0 0
    %1259 = vmatprep.subr.bf16.mxu0 0
    %1260 = vmatpush1.bf16.msra.mxu0 0
    %1261 = vmatprep.subr.bf16.mxu0 0
    %1262 = vmatpush1.bf16.msra.mxu0 0
    %1263 = vmatprep.subr.bf16.mxu0 0
    %1264 = vmatpush1.bf16.msra.mxu0 0
    %1265 = vmatprep.mubr.bf16.mxu0 0
    %1266 = vmatmul.mubr.bf16.gmra.mrb[0].mxu0 %v1232
    %v1267 = vpop.f32.mrb[0].mxu0
    %v1268 = vadd.f32 %v507, %v1267
    %v1269 = vpop.f32.mrb[0].mxu0
    %v1270 = vpop.f32.mrb[0].mxu0
    %v1271 = vpop.f32.mrb[0].mxu0
    %1272 = vdwg.mxu0
    %v1273 = vadd.f32 %v1171, %v1268
    %v1274 = vxor.u32 %v1273, 2147483648
    %v1275 = vmul.f32 %v1274, 1.442695
    %v1276 = vpow.pop %v1275
    %v1277 = vadd.f32 %v1276, 1.0
    %v1278 = vrcp.pop %v1277
    %v1279 = vmul.f32 1.0, %v1278
    %1280 = vrot.lane.b32.xlu0 %v1279, 64
    %v1281 = vpop.permute.xlu0 %1280
    %1282 = vrot.lane.b32.xlu0 %v1279, 96
    %v1283 = vpop.permute.xlu0 %1282
    %v1284 = vmul.f32 %v1281, %v1268
    %v1285 = vadd.f32 %v1171, %v1284
    %v1286 = vtanh.pop %v1285
    %v1287 = vsub.f32 1.0, %v1283
    %v1288 = vmul.f32 %v1287, %v1286
    %v1289 = vmul.f32 %v1283, %v1164
    %v1290 = vadd.f32 %v1288, %v1289
    %v1291 = vsel %vm831, %v1290, %v1164
    %v1292 = vld [vmem:[#allocation2 + $0x30] sm:$0xf]
    %v1293 = vunpack.c.l.bf16 %v1292
    %v1294 = vld [vmem:[#allocation2 + $0x8] sm:$0xf0]
    %v1296 = vrot.slane %v1294, 4
    %v1298 = vunpack.c.l.bf16 %v1296
    %v1299 = vpack.c.bf16 %v1231, %v1231
    %1300 = vmatprep.subr.bf16.mxu0 0
    %1301 = vmatpush1.bf16.msra.mxu0 %v405
    %1302 = vmatprep.subr.bf16.mxu0 0
    %1303 = vmatpush1.bf16.msra.mxu0 %v406
    %1304 = vmatprep.subr.bf16.mxu0 0
    %1305 = vmatpush1.bf16.msra.mxu0 %v407
    %1306 = vmatprep.subr.bf16.mxu0 0
    %1307 = vmatpush1.bf16.msra.mxu0 %v408
    %1308 = vmatprep.subr.bf16.mxu0 0
    %1309 = vmatpush1.bf16.msra.mxu0 %v409
    %1310 = vmatprep.subr.bf16.mxu0 0
    %1311 = vmatpush1.bf16.msra.mxu0 %v410
    %1312 = vmatprep.subr.bf16.mxu0 0
    %1313 = vmatpush1.bf16.msra.mxu0 %v411
    %1314 = vmatprep.subr.bf16.mxu0 0
    %1315 = vmatpush1.bf16.msra.mxu0 %v412
    %1316 = vmatprep.subr.bf16.mxu0 0
    %1317 = vmatpush1.bf16.msra.mxu0 0
    %1318 = vmatprep.subr.bf16.mxu0 0
    %1319 = vmatpush1.bf16.msra.mxu0 0
    %1320 = vmatprep.subr.bf16.mxu0 0
    %1321 = vmatpush1.bf16.msra.mxu0 0
    %1322 = vmatprep.subr.bf16.mxu0 0
    %1323 = vmatpush1.bf16.msra.mxu0 0
    %1324 = vmatprep.subr.bf16.mxu0 0
    %1325 = vmatpush1.bf16.msra.mxu0 0
    %1326 = vmatprep.subr.bf16.mxu0 0
    %1327 = vmatpush1.bf16.msra.mxu0 0
    %1328 = vmatprep.subr.bf16.mxu0 0
    %1329 = vmatpush1.bf16.msra.mxu0 0
    %1330 = vmatprep.subr.bf16.mxu0 0
    %1331 = vmatpush1.bf16.msra.mxu0 0
    %1332 = vmatprep.mubr.bf16.mxu0 0
    %1333 = vmatmul.mubr.bf16.gmra.mrb[0].mxu0 %v1299
    %v1334 = vpop.f32.mrb[0].mxu0
    %v1335 = vadd.f32 %v371, %v1334
    %v1336 = vpop.f32.mrb[0].mxu0
    %v1337 = vpop.f32.mrb[0].mxu0
    %v1338 = vpop.f32.mrb[0].mxu0
    %1339 = vdwg.mxu0
    %v1340 = vadd.f32 %v1293, %v1335
    %v1341 = vxor.u32 %v1340, 2147483648
    %v1342 = vmul.f32 %v1341, 1.442695
    %v1343 = vpow.pop %v1342
    %v1344 = vadd.f32 %v1343, 1.0
    %v1345 = vrcp.pop %v1344
    %v1346 = vmul.f32 1.0, %v1345
    %1347 = vrot.lane.b32.xlu0 %v1346, 64
    %v1348 = vpop.permute.xlu0 %1347
    %1349 = vrot.lane.b32.xlu0 %v1346, 96
    %v1350 = vpop.permute.xlu0 %1349
    %v1351 = vmul.f32 %v1348, %v1335
    %v1352 = vadd.f32 %v1293, %v1351
    %v1353 = vtanh.pop %v1352
    %v1354 = vsub.f32 1.0, %v1350
    %v1355 = vmul.f32 %v1354, %v1353
    %v1356 = vmul.f32 %v1350, %v1231
    %v1357 = vadd.f32 %v1355, %v1356
    %v1358 = vsel %vm758, %v1357, %v1231
    %v1359 = vpack.c.bf16 %v1291, %v1291
    %1360 = vmatprep.subr.bf16.mxu0 0
    %1361 = vmatpush1.bf16.msra.mxu0 %v541
    %1362 = vmatprep.subr.bf16.mxu0 0
    %1363 = vmatpush1.bf16.msra.mxu0 %v542
    %1364 = vmatprep.subr.bf16.mxu0 0
    %1365 = vmatpush1.bf16.msra.mxu0 %v543
    %1366 = vmatprep.subr.bf16.mxu0 0
    %1367 = vmatpush1.bf16.msra.mxu0 %v544
    %1368 = vmatprep.subr.bf16.mxu0 0
    %1369 = vmatpush1.bf16.msra.mxu0 %v545
    %1370 = vmatprep.subr.bf16.mxu0 0
    %1371 = vmatpush1.bf16.msra.mxu0 %v546
    %1372 = vmatprep.subr.bf16.mxu0 0
    %1373 = vmatpush1.bf16.msra.mxu0 %v547
    %1374 = vmatprep.subr.bf16.mxu0 0
    %1375 = vmatpush1.bf16.msra.mxu0 %v548
    %1376 = vmatprep.subr.bf16.mxu0 0
    %1377 = vmatpush1.bf16.msra.mxu0 0
    %1378 = vmatprep.subr.bf16.mxu0 0
    %1379 = vmatpush1.bf16.msra.mxu0 0
    %1380 = vmatprep.subr.bf16.mxu0 0
    %1381 = vmatpush1.bf16.msra.mxu0 0
    %1382 = vmatprep.subr.bf16.mxu0 0
    %1383 = vmatpush1.bf16.msra.mxu0 0
    %1384 = vmatprep.subr.bf16.mxu0 0
    %1385 = vmatpush1.bf16.msra.mxu0 0
    %1386 = vmatprep.subr.bf16.mxu0 0
    %1387 = vmatpush1.bf16.msra.mxu0 0
    %1388 = vmatprep.subr.bf16.mxu0 0
    %1389 = vmatpush1.bf16.msra.mxu0 0
    %1390 = vmatprep.subr.bf16.mxu0 0
    %1391 = vmatpush1.bf16.msra.mxu0 0
    %1392 = vmatprep.mubr.bf16.mxu0 0
    %1393 = vmatmul.mubr.bf16.gmra.mrb[0].mxu0 %v1359
    %v1394 = vpop.f32.mrb[0].mxu0
    %v1395 = vadd.f32 %v507, %v1394
    %v1396 = vpop.f32.mrb[0].mxu0
    %v1397 = vpop.f32.mrb[0].mxu0
    %v1398 = vpop.f32.mrb[0].mxu0
    %1399 = vdwg.mxu0
    %v1400 = vadd.f32 %v1298, %v1395
    %v1401 = vxor.u32 %v1400, 2147483648
    %v1402 = vmul.f32 %v1401, 1.442695
    %v1403 = vpow.pop %v1402
    %v1404 = vadd.f32 %v1403, 1.0
    %v1405 = vrcp.pop %v1404
    %v1406 = vmul.f32 1.0, %v1405
    %1407 = vrot.lane.b32.xlu0 %v1406, 64
    %v1408 = vpop.permute.xlu0 %1407
    %1409 = vrot.lane.b32.xlu0 %v1406, 96
    %v1410 = vpop.permute.xlu0 %1409
    %v1411 = vmul.f32 %v1408, %v1395
    %v1412 = vadd.f32 %v1298, %v1411
    %v1413 = vtanh.pop %v1412
    %v1414 = vsub.f32 1.0, %v1410
    %v1415 = vmul.f32 %v1414, %v1413
    %v1416 = vmul.f32 %v1410, %v1291
    %v1417 = vadd.f32 %v1415, %v1416
    %v1418 = vsel %vm692, %v1417, %v1291
    %v1419 = vld [vmem:[#allocation2 + $0x30] sm:$0xf0]
    %v1421 = vrot.slane %v1419, 4
    %v1423 = vunpack.c.l.bf16 %v1421
    %v1424 = vld [vmem:[#allocation2 + $0x8] sm:$0xf]
    %v1425 = vunpack.c.l.bf16 %v1424
    %v1426 = vpack.c.bf16 %v1358, %v1358
    %1427 = vmatprep.subr.bf16.mxu0 0
    %1428 = vmatpush1.bf16.msra.mxu0 %v405
    %1429 = vmatprep.subr.bf16.mxu0 0
    %1430 = vmatpush1.bf16.msra.mxu0 %v406
    %1431 = vmatprep.subr.bf16.mxu0 0
    %1432 = vmatpush1.bf16.msra.mxu0 %v407
    %1433 = vmatprep.subr.bf16.mxu0 0
    %1434 = vmatpush1.bf16.msra.mxu0 %v408
    %1435 = vmatprep.subr.bf16.mxu0 0
    %1436 = vmatpush1.bf16.msra.mxu0 %v409
    %1437 = vmatprep.subr.bf16.mxu0 0
    %1438 = vmatpush1.bf16.msra.mxu0 %v410
    %1439 = vmatprep.subr.bf16.mxu0 0
    %1440 = vmatpush1.bf16.msra.mxu0 %v411
    %1441 = vmatprep.subr.bf16.mxu0 0
    %1442 = vmatpush1.bf16.msra.mxu0 %v412
    %1443 = vmatprep.subr.bf16.mxu0 0
    %1444 = vmatpush1.bf16.msra.mxu0 0
    %1445 = vmatprep.subr.bf16.mxu0 0
    %1446 = vmatpush1.bf16.msra.mxu0 0
    %1447 = vmatprep.subr.bf16.mxu0 0
    %1448 = vmatpush1.bf16.msra.mxu0 0
    %1449 = vmatprep.subr.bf16.mxu0 0
    %1450 = vmatpush1.bf16.msra.mxu0 0
    %1451 = vmatprep.subr.bf16.mxu0 0
    %1452 = vmatpush1.bf16.msra.mxu0 0
    %1453 = vmatprep.subr.bf16.mxu0 0
    %1454 = vmatpush1.bf16.msra.mxu0 0
    %1455 = vmatprep.subr.bf16.mxu0 0
    %1456 = vmatpush1.bf16.msra.mxu0 0
    %1457 = vmatprep.subr.bf16.mxu0 0
    %1458 = vmatpush1.bf16.msra.mxu0 0
    %1459 = vmatprep.mubr.bf16.mxu0 0
    %1460 = vmatmul.mubr.bf16.gmra.mrb[0].mxu0 %v1426
    %v1461 = vpop.f32.mrb[0].mxu0
    %v1462 = vadd.f32 %v371, %v1461
    %v1463 = vpop.f32.mrb[0].mxu0
    %v1464 = vpop.f32.mrb[0].mxu0
    %v1465 = vpop.f32.mrb[0].mxu0
    %1466 = vdwg.mxu0
    %v1467 = vadd.f32 %v1423, %v1462
    %v1468 = vxor.u32 %v1467, 2147483648
    %v1469 = vmul.f32 %v1468, 1.442695
    %v1470 = vpow.pop %v1469
    %v1471 = vadd.f32 %v1470, 1.0
    %v1472 = vrcp.pop %v1471
    %v1473 = vmul.f32 1.0, %v1472
    %1474 = vrot.lane.b32.xlu0 %v1473, 64
    %v1475 = vpop.permute.xlu0 %1474
    %1476 = vrot.lane.b32.xlu0 %v1473, 96
    %v1477 = vpop.permute.xlu0 %1476
    %v1478 = vmul.f32 %v1475, %v1462
    %v1479 = vadd.f32 %v1423, %v1478
    %v1480 = vtanh.pop %v1479
    %v1481 = vsub.f32 1.0, %v1477
    %v1482 = vmul.f32 %v1481, %v1480
    %v1483 = vmul.f32 %v1477, %v1358
    %v1484 = vadd.f32 %v1482, %v1483
    %v1485 = vsel %vm619, %v1484, %v1358
    %v1486 = vpack.c.bf16 %v1418, %v1418
    %1487 = vmatprep.subr.bf16.mxu0 0
    %1488 = vmatpush1.bf16.msra.mxu0 %v541
    %1489 = vmatprep.subr.bf16.mxu0 0
    %1490 = vmatpush1.bf16.msra.mxu0 %v542
    %1491 = vmatprep.subr.bf16.mxu0 0
    %1492 = vmatpush1.bf16.msra.mxu0 %v543
    %1493 = vmatprep.subr.bf16.mxu0 0
    %1494 = vmatpush1.bf16.msra.mxu0 %v544
    %1495 = vmatprep.subr.bf16.mxu0 0
    %1496 = vmatpush1.bf16.msra.mxu0 %v545
    %1497 = vmatprep.subr.bf16.mxu0 0
    %1498 = vmatpush1.bf16.msra.mxu0 %v546
    %1499 = vmatprep.subr.bf16.mxu0 0
    %1500 = vmatpush1.bf16.msra.mxu0 %v547
    %1501 = vmatprep.subr.bf16.mxu0 0
    %1502 = vmatpush1.bf16.msra.mxu0 %v548
    %1503 = vmatprep.subr.bf16.mxu0 0
    %1504 = vmatpush1.bf16.msra.mxu0 0
    %1505 = vmatprep.subr.bf16.mxu0 0
    %1506 = vmatpush1.bf16.msra.mxu0 0
    %1507 = vmatprep.subr.bf16.mxu0 0
    %1508 = vmatpush1.bf16.msra.mxu0 0
    %1509 = vmatprep.subr.bf16.mxu0 0
    %1510 = vmatpush1.bf16.msra.mxu0 0
    %1511 = vmatprep.subr.bf16.mxu0 0
    %1512 = vmatpush1.bf16.msra.mxu0 0
    %1513 = vmatprep.subr.bf16.mxu0 0
    %1514 = vmatpush1.bf16.msra.mxu0 0
    %1515 = vmatprep.subr.bf16.mxu0 0
    %1516 = vmatpush1.bf16.msra.mxu0 0
    %1517 = vmatprep.subr.bf16.mxu0 0
    %1518 = vmatpush1.bf16.msra.mxu0 0
    %1519 = vmatprep.mubr.bf16.mxu0 0
    %1520 = vmatmul.mubr.bf16.gmra.mrb[0].mxu0 %v1486
    %v1521 = vpop.f32.mrb[0].mxu0
    %v1522 = vadd.f32 %v507, %v1521
    %v1523 = vpop.f32.mrb[0].mxu0
    %v1524 = vpop.f32.mrb[0].mxu0
    %v1525 = vpop.f32.mrb[0].mxu0
    %1526 = vdwg.mxu0
    %v1527 = vadd.f32 %v1425, %v1522
    %v1528 = vxor.u32 %v1527, 2147483648
    %v1529 = vmul.f32 %v1528, 1.442695
    %v1530 = vpow.pop %v1529
    %v1531 = vadd.f32 %v1530, 1.0
    %v1532 = vrcp.pop %v1531
    %v1533 = vmul.f32 1.0, %v1532
    %1534 = vrot.lane.b32.xlu0 %v1533, 64
    %v1535 = vpop.permute.xlu0 %1534
    %1536 = vrot.lane.b32.xlu0 %v1533, 96
    %v1537 = vpop.permute.xlu0 %1536
    %v1538 = vmul.f32 %v1535, %v1522
    %v1539 = vadd.f32 %v1425, %v1538
    %v1540 = vtanh.pop %v1539
    %v1541 = vsub.f32 1.0, %v1537
    %v1542 = vmul.f32 %v1541, %v1540
    %v1543 = vmul.f32 %v1537, %v1418
    %v1544 = vadd.f32 %v1542, %v1543
    %v1545 = vsel %vm483, %v1544, %v1418
    %v1546 = vpack.c.bf16 %v1485, %v1485
    %v1547 = vpack.c.bf16 %v1545, %v1545
    %v1548 = vld [vmem:[#allocation7] sm:$0xf]
    %v1549 = vld [vmem:[#allocation7 + $0x4] sm:$0xf]
    %v1550 = vld [vmem:[#allocation7 + $0x8] sm:$0xf]
    %v1551 = vld [vmem:[#allocation7 + $0xc] sm:$0xf]
    %v1552 = vld [vmem:[#allocation7 + $0x10] sm:$0xf]
    %v1553 = vld [vmem:[#allocation7 + $0x14] sm:$0xf]
    %v1554 = vld [vmem:[#allocation7 + $0x18] sm:$0xf]
    %v1555 = vld [vmem:[#allocation7 + $0x1c] sm:$0xf]
    %v1556 = vld [vmem:[#allocation7 + $0x20] sm:$0xf]
    %v1557 = vld [vmem:[#allocation7 + $0x24] sm:$0xf]
    %v1558 = vld [vmem:[#allocation7 + $0x28] sm:$0xf]
    %v1559 = vld [vmem:[#allocation7 + $0x2c] sm:$0xf]
    %v1560 = vld [vmem:[#allocation7 + $0x30] sm:$0xf]
    %v1561 = vld [vmem:[#allocation7 + $0x34] sm:$0xf]
    %v1562 = vld [vmem:[#allocation7 + $0x38] sm:$0xf]
    %v1563 = vld [vmem:[#allocation7 + $0x3c] sm:$0xf]
    %v1564 = vld [vmem:[#allocation7 + $0x40] sm:$0xf]
    %v1565 = vld [vmem:[#allocation7 + $0x44] sm:$0xf]
    %v1566 = vld [vmem:[#allocation7 + $0x48] sm:$0xf]
    %v1567 = vld [vmem:[#allocation7 + $0x4c] sm:$0xf]
    %v1568 = vld [vmem:[#allocation7 + $0x50] sm:$0xf]
    %v1569 = vld [vmem:[#allocation7 + $0x54] sm:$0xf]
    %v1570 = vld [vmem:[#allocation7 + $0x58] sm:$0xf]
    %v1571 = vld [vmem:[#allocation7 + $0x5c] sm:$0xf]
    %v1572 = vld [vmem:[#allocation7 + $0x60] sm:$0xf]
    %v1573 = vld [vmem:[#allocation7 + $0x64] sm:$0xf]
    %v1574 = vld [vmem:[#allocation7 + $0x68] sm:$0xf]
    %v1575 = vld [vmem:[#allocation7 + $0x6c] sm:$0xf]
    %v1576 = vld [vmem:[#allocation7 + $0x70] sm:$0xf]
    %v1577 = vld [vmem:[#allocation7 + $0x74] sm:$0xf]
    %v1578 = vld [vmem:[#allocation7 + $0x78] sm:$0xf]
    %v1579 = vld [vmem:[#allocation7 + $0x7c] sm:$0xf]
    %v1580 = vld [vmem:[%s8] sm:$0x1]
    %v1582 = vlaneseq
    %v1583 = vshrl.u32 %v1582, 7
    %v1584 = vsub.s32 0, %v1583
    %v1585 = vrot.slane %v1580, %v1584
    %v1619 = vunpack.c.l.b16 %v1548
    %v1620 = vunpack.c.l.b16 %v1549
    %v1621 = vunpack.c.l.b16 %v1550
    %v1622 = vunpack.c.l.b16 %v1551
    %v1623 = vunpack.c.l.b16 %v1552
    %v1624 = vunpack.c.l.b16 %v1553
    %v1625 = vunpack.c.l.b16 %v1554
    %v1626 = vunpack.c.l.b16 %v1555
    %v1627 = vunpack.c.l.b16 %v1556
    %v1628 = vunpack.c.l.b16 %v1557
    %v1629 = vunpack.c.l.b16 %v1558
    %v1630 = vunpack.c.l.b16 %v1559
    %v1631 = vunpack.c.l.b16 %v1560
    %v1632 = vunpack.c.l.b16 %v1561
    %v1633 = vunpack.c.l.b16 %v1562
    %v1634 = vunpack.c.l.b16 %v1563
    %v1635 = vunpack.c.l.b16 %v1564
    %v1636 = vunpack.c.l.b16 %v1565
    %v1637 = vunpack.c.l.b16 %v1566
    %v1638 = vunpack.c.l.b16 %v1567
    %v1639 = vunpack.c.l.b16 %v1568
    %v1640 = vunpack.c.l.b16 %v1569
    %v1641 = vunpack.c.l.b16 %v1570
    %v1642 = vunpack.c.l.b16 %v1571
    %v1643 = vunpack.c.l.b16 %v1572
    %v1644 = vunpack.c.l.b16 %v1573
    %v1645 = vunpack.c.l.b16 %v1574
    %v1646 = vunpack.c.l.b16 %v1575
    %v1647 = vunpack.c.l.b16 %v1576
    %v1648 = vunpack.c.l.b16 %v1577
    %v1649 = vunpack.c.l.b16 %v1578
    %v1650 = vunpack.c.l.b16 %v1579
    %v1651 = vpack.c.b16 %v1620, %v1619
    %v1652 = vpack.c.b16 %v1622, %v1621
    %v1653 = vpack.c.b16 %v1624, %v1623
    %v1654 = vpack.c.b16 %v1626, %v1625
    %v1655 = vpack.c.b16 %v1628, %v1627
    %v1656 = vpack.c.b16 %v1630, %v1629
    %v1657 = vpack.c.b16 %v1632, %v1631
    %v1658 = vpack.c.b16 %v1634, %v1633
    %v1659 = vpack.c.b16 %v1636, %v1635
    %v1660 = vpack.c.b16 %v1638, %v1637
    %v1661 = vpack.c.b16 %v1640, %v1639
    %v1662 = vpack.c.b16 %v1642, %v1641
    %v1663 = vpack.c.b16 %v1644, %v1643
    %v1664 = vpack.c.b16 %v1646, %v1645
    %v1665 = vpack.c.b16 %v1648, %v1647
    %v1666 = vpack.c.b16 %v1650, %v1649
    %1683 = vmatprep.subr.bf16.mxu0 0
    %1684 = vmatpush1.bf16.msra.mxu0 %v1651
    %1685 = vmatprep.subr.bf16.mxu0 0
    %1686 = vmatpush1.bf16.msra.mxu0 %v1652
    %1687 = vmatprep.subr.bf16.mxu0 0
    %1688 = vmatpush1.bf16.msra.mxu0 %v1653
    %1689 = vmatprep.subr.bf16.mxu0 0
    %1690 = vmatpush1.bf16.msra.mxu0 %v1654
    %1691 = vmatprep.subr.bf16.mxu0 0
    %1692 = vmatpush1.bf16.msra.mxu0 %v1655
    %1693 = vmatprep.subr.bf16.mxu0 0
    %1694 = vmatpush1.bf16.msra.mxu0 %v1656
    %1695 = vmatprep.subr.bf16.mxu0 0
    %1696 = vmatpush1.bf16.msra.mxu0 %v1657
    %1697 = vmatprep.subr.bf16.mxu0 0
    %1698 = vmatpush1.bf16.msra.mxu0 %v1658
    %1699 = vmatprep.subr.bf16.mxu0 0
    %1700 = vmatpush1.bf16.msra.mxu0 %v1659
    %1701 = vmatprep.subr.bf16.mxu0 0
    %1702 = vmatpush1.bf16.msra.mxu0 %v1660
    %1703 = vmatprep.subr.bf16.mxu0 0
    %1704 = vmatpush1.bf16.msra.mxu0 %v1661
    %1705 = vmatprep.subr.bf16.mxu0 0
    %1706 = vmatpush1.bf16.msra.mxu0 %v1662
    %1707 = vmatprep.subr.bf16.mxu0 0
    %1708 = vmatpush1.bf16.msra.mxu0 %v1663
    %1709 = vmatprep.subr.bf16.mxu0 0
    %1710 = vmatpush1.bf16.msra.mxu0 %v1664
    %1711 = vmatprep.subr.bf16.mxu0 0
    %1712 = vmatpush1.bf16.msra.mxu0 %v1665
    %1713 = vmatprep.subr.bf16.mxu0 0
    %1714 = vmatpush1.bf16.msra.mxu0 %v1666
    %1715 = vmatprep.mubr.bf16.mxu0 %v1547
    %1716 = vmatmul.mubr.bf16.gmra.mrb[0].mxu0 %v1546
    %v1717 = vpop.f32.mrb[0].mxu0
    %v1718 = vadd.f32 %v1585, %v1717
    %v1719 = vpop.f32.mrb[0].mxu0
    %v1720 = vpop.f32.mrb[0].mxu0
    %v1721 = vpop.f32.mrb[0].mxu0
    %1722 = vdwg.mxu0
    %vm1723 = vcmp.gt.f32.partialorder %v1718, 0.0
    %v1724 = vmul.f32 %v1718, 0.01
    %v1725 = vsel %vm1723, %v1718, %v1724
    %v1726 = vpack.c.bf16 %v1725, %v1725
    %v1727 = vld [vmem:[#allocation8] sm:$0xf]
    %v1728 = vld [vmem:[#allocation8 + $0x4] sm:$0xf]
    %v1729 = vld [vmem:[#allocation8 + $0x8] sm:$0xf]
    %v1730 = vld [vmem:[#allocation8 + $0xc] sm:$0xf]
    %v1731 = vld [vmem:[#allocation8 + $0x10] sm:$0xf]
    %v1732 = vld [vmem:[#allocation8 + $0x14] sm:$0xf]
    %v1733 = vld [vmem:[#allocation8 + $0x18] sm:$0xf]
    %v1734 = vld [vmem:[#allocation8 + $0x1c] sm:$0xf]
    %v1735 = vld [vmem:[#allocation8 + $0x20] sm:$0xf]
    %v1736 = vld [vmem:[#allocation8 + $0x24] sm:$0xf]
    %v1737 = vld [vmem:[#allocation8 + $0x28] sm:$0xf]
    %v1738 = vld [vmem:[#allocation8 + $0x2c] sm:$0xf]
    %v1739 = vld [vmem:[#allocation8 + $0x30] sm:$0xf]
    %v1740 = vld [vmem:[#allocation8 + $0x34] sm:$0xf]
    %v1741 = vld [vmem:[#allocation8 + $0x38] sm:$0xf]
    %v1742 = vld [vmem:[#allocation8 + $0x3c] sm:$0xf]
    %v1743 = vld [vmem:[%s10] sm:$0x1]
    %v1745 = vlaneseq
    %v1746 = vshrl.u32 %v1745, 7
    %v1747 = vsub.s32 0, %v1746
    %v1748 = vrot.slane %v1743, %v1747
    %v1766 = vunpack.c.l.b16 %v1727
    %v1767 = vunpack.c.l.b16 %v1728
    %v1768 = vunpack.c.l.b16 %v1729
    %v1769 = vunpack.c.l.b16 %v1730
    %v1770 = vunpack.c.l.b16 %v1731
    %v1771 = vunpack.c.l.b16 %v1732
    %v1772 = vunpack.c.l.b16 %v1733
    %v1773 = vunpack.c.l.b16 %v1734
    %v1774 = vunpack.c.l.b16 %v1735
    %v1775 = vunpack.c.l.b16 %v1736
    %v1776 = vunpack.c.l.b16 %v1737
    %v1777 = vunpack.c.l.b16 %v1738
    %v1778 = vunpack.c.l.b16 %v1739
    %v1779 = vunpack.c.l.b16 %v1740
    %v1780 = vunpack.c.l.b16 %v1741
    %v1781 = vunpack.c.l.b16 %v1742
    %v1782 = vpack.c.b16 %v1767, %v1766
    %v1783 = vpack.c.b16 %v1769, %v1768
    %v1784 = vpack.c.b16 %v1771, %v1770
    %v1785 = vpack.c.b16 %v1773, %v1772
    %v1786 = vpack.c.b16 %v1775, %v1774
    %v1787 = vpack.c.b16 %v1777, %v1776
    %v1788 = vpack.c.b16 %v1779, %v1778
    %v1789 = vpack.c.b16 %v1781, %v1780
    %1798 = vmatprep.subr.bf16.mxu0 0
    %1799 = vmatpush1.bf16.msra.mxu0 %v1782
    %1800 = vmatprep.subr.bf16.mxu0 0
    %1801 = vmatpush1.bf16.msra.mxu0 %v1783
    %1802 = vmatprep.subr.bf16.mxu0 0
    %1803 = vmatpush1.bf16.msra.mxu0 %v1784
    %1804 = vmatprep.subr.bf16.mxu0 0
    %1805 = vmatpush1.bf16.msra.mxu0 %v1785
    %1806 = vmatprep.subr.bf16.mxu0 0
    %1807 = vmatpush1.bf16.msra.mxu0 %v1786
    %1808 = vmatprep.subr.bf16.mxu0 0
    %1809 = vmatpush1.bf16.msra.mxu0 %v1787
    %1810 = vmatprep.subr.bf16.mxu0 0
    %1811 = vmatpush1.bf16.msra.mxu0 %v1788
    %1812 = vmatprep.subr.bf16.mxu0 0
    %1813 = vmatpush1.bf16.msra.mxu0 %v1789
    %1814 = vmatprep.subr.bf16.mxu0 0
    %1815 = vmatpush1.bf16.msra.mxu0 0
    %1816 = vmatprep.subr.bf16.mxu0 0
    %1817 = vmatpush1.bf16.msra.mxu0 0
    %1818 = vmatprep.subr.bf16.mxu0 0
    %1819 = vmatpush1.bf16.msra.mxu0 0
    %1820 = vmatprep.subr.bf16.mxu0 0
    %1821 = vmatpush1.bf16.msra.mxu0 0
    %1822 = vmatprep.subr.bf16.mxu0 0
    %1823 = vmatpush1.bf16.msra.mxu0 0
    %1824 = vmatprep.subr.bf16.mxu0 0
    %1825 = vmatpush1.bf16.msra.mxu0 0
    %1826 = vmatprep.subr.bf16.mxu0 0
    %1827 = vmatpush1.bf16.msra.mxu0 0
    %1828 = vmatprep.subr.bf16.mxu0 0
    %1829 = vmatpush1.bf16.msra.mxu0 0
    %1830 = vmatprep.mubr.bf16.mxu0 0
    %1831 = vmatmul.mubr.bf16.gmra.mrb[0].mxu0 %v1726
    %v1832 = vpop.f32.mrb[0].mxu0
    %v1833 = vadd.f32 %v1748, %v1832
    %v1834 = vpop.f32.mrb[0].mxu0
    %v1835 = vpop.f32.mrb[0].mxu0
    %v1836 = vpop.f32.mrb[0].mxu0
    %1837 = vdwg.mxu0
    %1838 = vst [vmem:[%s11] sm:$0xff] %v1833
    // Predicated region
    $region62: #{vocab_corrector_forward.1} parent=1 // pred_check
      _
    $region63: #{vocab_corrector_forward.1} parent=1 // pred_check_branch
      %1840 = sbr.rel (0) target = $region65
    $region64: #{vocab_corrector_forward.1} parent=1 // pred_region
      _
    $region65: #{vocab_corrector_forward.1} parent=1 // pred_fallthru
      _
    // Predicated region
    $region66: #{vocab_corrector_forward.1} parent=1 // pred_check
      _
    $region67: #{vocab_corrector_forward.1} parent=1 // pred_check_branch
      %1842 = sbr.rel (0) target = $region69
    $region68: #{vocab_corrector_forward.1} parent=1 // pred_region
      _
    $region69: #{vocab_corrector_forward.1} parent=1 // pred_fallthru
      _
    %1843 = vsyncpa [#allocation4], 1
    %1844 = vsyncpa [#allocation6], 1
    %1845 = vsyncpa [#allocation9], 1

</llo_original>
